<compile_context>
chip_gen: v5e
topology: v5e:2x2
jax: 0.10.0
libtpu: 0.0.40
codegen_flags: <defaults>
</compile_context>

<pallas_src>
import jax
import jax.numpy as jnp
from jax.experimental import pallas as pl
from jax.experimental.pallas import tpu as pltpu

EPS = 1e-5                              # nn.BatchNorm2d default eps
_TARGET_TILE_BYTES = 2 * 1024 * 1024    # per-step g+x streaming target
_MAX_BS = 16384                         # lane-block cap (review: 8K-16K)


# --------------------------------------------------------------------------- #
# Tiling helpers
# --------------------------------------------------------------------------- #
def _divisors(n):
    ds, i = set(), 1
    while i * i <= n:
        if n % i == 0:
            ds.add(i)
            ds.add(n // i)
        i += 1
    return sorted(ds)


def _vmem_limit_bytes():
    """Generation-aware scoped-VMEM limit (~48 MiB on v7x, ~96 MiB on v5e/v6e)."""
    try:
        cap = int(pltpu.get_tpu_info().vmem_capacity_bytes)
    except Exception:                    # interpret mode / older API
        cap = 64 * 1024 * 1024
    return max(32 * 1024 * 1024, min(cap - 16 * 1024 * 1024, 96 * 1024 * 1024))


def _choose_tiles(N, HW, Fg, Fl, Fint, budget):
    """Pick (bn, bs): batch-block and spatial-block sizes under a VMEM budget."""
    in_bpp = 4 * (Fg + Fl)               # g + x f32 bytes per pixel

    def vmem_need(bn, bs):
        pix = bn * bs
        need = 2 * pix * in_bpp                        # double-buffered g/x tiles
        need = max(need, 2 * pix * 4 * (2 * Fl + 1))   # pass 3: x + psi + out
        need += 2 * pix * 4                            # psi_pre tile
        need += 4 * bn * 3 * Fint * bs                 # pass-2 f32 intermediates
        need += 6 * 4 * Fint * 128                     # stats scratch + slack
        return need

    divs = [d for d in _divisors(HW) if d % 128 == 0 and d <= _MAX_BS]
    if not divs:
        # TODO(synk): HW with no multiple-of-128 divisor falls back to one
        # lane-padded full-HW block per image; tile along H (W on lanes) if this
        # ever exceeds the VMEM budget for very large C*HW.
        divs = [HW]
    fitting = [d for d in divs if vmem_need(1, d) <= budget] or [min(divs)]
    hit = [d for d in fitting if d * in_bpp >= _TARGET_TILE_BYTES]
    bs = min(hit) if hit else max(fitting)

    bn = 1
    for cand in _divisors(N)[1:]:          # ascending divisors of N, skip 1
        if bn * bs * in_bpp >= _TARGET_TILE_BYTES:
            break
        if vmem_need(cand, bs) > budget:
            break
        bn = cand
    return bn, bs


def _lane_partial(v):
    """(R, C) -> (R, 128) partial lane sums using VPU adds only (no XLU)."""
    r, c = v.shape
    nfull = c // 128
    acc = None
    for k in range(nfull):
        chunk = v[:, k * 128:(k + 1) * 128]
        acc = chunk if acc is None else acc + chunk
    rem = c - nfull * 128
    if rem:
        tail = jnp.sum(v[:, nfull * 128:], axis=-1, keepdims=True)       # (R, 1)
        lane0 = jax.lax.broadcasted_iota(jnp.int32, (r, 128), 1) == 0
        tail = jnp.where(lane0, tail, 0.0)
        acc = tail if acc is None else acc + tail
    return acc


# --------------------------------------------------------------------------- #
# Pass 1: per-channel sum / sum-of-squares of the two (bias-free) conv branches.
# --------------------------------------------------------------------------- #
def _stats_kernel(g_ref, x_ref, wgT_ref, wxT_ref, stats_ref,
                  sg_ref, sgg_ref, sx_ref, sxx_ref):
    @pl.when(pl.program_id(1) == 0)
    def _():
        sg_ref[...] = jnp.zeros_like(sg_ref)
        sgg_ref[...] = jnp.zeros_like(sgg_ref)
        sx_ref[...] = jnp.zeros_like(sx_ref)
        sxx_ref[...] = jnp.zeros_like(sxx_ref)

    for i in range(g_ref.shape[0]):                     # static batch-block loop
        g1 = jnp.dot(wgT_ref[...], g_ref[i], preferred_element_type=jnp.float32)
        x1 = jnp.dot(wxT_ref[...], x_ref[i], preferred_element_type=jnp.float32)
        sg_ref[...] += _lane_partial(g1)
        sgg_ref[...] += _lane_partial(g1 * g1)
        sx_ref[...] += _lane_partial(x1)
        sxx_ref[...] += _lane_partial(x1 * x1)

    @pl.when(pl.program_id(1) == pl.num_programs(1) - 1)
    def _():
        stats_ref[0, :, 0:1] = jnp.sum(sg_ref[...], axis=-1, keepdims=True)
        stats_ref[0, :, 1:2] = jnp.sum(sgg_ref[...], axis=-1, keepdims=True)
        stats_ref[0, :, 2:3] = jnp.sum(sx_ref[...], axis=-1, keepdims=True)
        stats_ref[0, :, 3:4] = jnp.sum(sxx_ref[...], axis=-1, keepdims=True)


# --------------------------------------------------------------------------- #
# Pass 2: psi pre-activation (BN folded into conv weights) + its scalar stats.
# --------------------------------------------------------------------------- #
def _psi_kernel(g_ref, x_ref, wgT_ref, wxT_ref, bcomb_ref, wpsi_ref,
                psi_ref, pstat_ref, sp_ref, spp_ref):
    @pl.when(pl.program_id(1) == 0)
    def _():
        sp_ref[...] = jnp.zeros_like(sp_ref)
        spp_ref[...] = jnp.zeros_like(spp_ref)

    for i in range(g_ref.shape[0]):
        a = jnp.dot(wgT_ref[...], g_ref[i], preferred_element_type=jnp.float32)
        a = a + jnp.dot(wxT_ref[...], x_ref[i], preferred_element_type=jnp.float32)
        a = jnp.maximum(a + bcomb_ref[...], 0.0)                  # (F_int, bs)
        # 1-channel psi conv: multiply + sublane reduce -> lane-dense (1, bs) row.
        p = jnp.sum(a * wpsi_ref[...], axis=0, keepdims=True)     # (1, bs)
        psi_ref[i] = p.astype(psi_ref.dtype)
        sp_ref[...] += _lane_partial(p)
        spp_ref[...] += _lane_partial(p * p)

    @pl.when(pl.program_id(1) == pl.num_programs(1) - 1)
    def _():
        pstat_ref[0, :, 0:1] = jnp.sum(sp_ref[...], axis=-1, keepdims=True)
        pstat_ref[0, :, 1:2] = jnp.sum(spp_ref[...], axis=-1, keepdims=True)


# --------------------------------------------------------------------------- #
# Pass 3: normalize psi, sigmoid, gate x.  Pure streaming, fully parallel.
# --------------------------------------------------------------------------- #
def _gate_kernel(sc_ref, x_ref, psi_ref, out_ref):
    s = sc_ref[0]                                          # SMEM scalars
    t = sc_ref[1]
    for i in range(x_ref.shape[0]):
        psi = jax.nn.sigmoid(psi_ref[i] * s + t)           # (1, bs)
        out_ref[i] = (x_ref[i] * psi).astype(out_ref.dtype)


# --------------------------------------------------------------------------- #
# Wrapper
# --------------------------------------------------------------------------- #
@jax.jit
def attention_gate(g_nchw, x_nchw, params):
    N, Fg, H, W = g_nchw.shape
    _, Fl, _, _ = x_nchw.shape
    Fint = params["wg"].shape[1]
    HW = H * W
    M = N * HW
    f32 = jnp.float32

    vmem_limit = _vmem_limit_bytes()
    bn, bs = _choose_tiles(N, HW, Fg, Fl, Fint, (vmem_limit * 3) // 4)
    gn, ns = N // bn, HW // bs
    grid = (gn, ns)

    cp_red = pltpu.CompilerParams(
        dimension_semantics=("parallel", "arbitrary"),
        vmem_limit_bytes=vmem_limit)
    cp_par = pltpu.CompilerParams(
        dimension_semantics=("parallel", "parallel"),
        vmem_limit_bytes=vmem_limit)

    # Channels-on-sublane / spatial-on-lane layout straight from NCHW.
    g3 = g_nchw.reshape(N, Fg, HW)
    x3 = x_nchw.reshape(N, Fl, HW)

    wgT = params["wg"].T.astype(f32)                       # (Fint, Fg)
    wxT = params["wx"].T.astype(f32)                       # (Fint, Fl)
    bg = jnp.asarray(params["bg"], f32)                    # (Fint,)
    bx = jnp.asarray(params["bx"], f32)

    def tile_spec(c):
        return pl.BlockSpec((bn, c, bs), lambda n, s: (n, 0, s))

    def const_spec(shape):
        return pl.BlockSpec(shape, lambda n, s: tuple(0 for _ in shape))

    # ------------------- pass 1: BN statistics of g1 / x1 --------------------
    cost1 = pl.CostEstimate(
        flops=int(2 * Fint * (Fg + Fl) * M + 6 * Fint * M),
        transcendentals=0,
        bytes_accessed=int(4 * (Fg + Fl) * M + 16 * Fint * gn))
    stats = pl.pallas_call(
        _stats_kernel,
        out_shape=jax.ShapeDtypeStruct((gn, Fint, 4), f32),
        grid=grid,
        in_specs=[tile_spec(Fg), tile_spec(Fl),
                  const_spec((Fint, Fg)), const_spec((Fint, Fl))],
        out_specs=pl.BlockSpec((1, Fint, 4), lambda n, s: (n, 0, 0)),
        scratch_shapes=[pltpu.VMEM((Fint, 128), f32) for _ in range(4)],
        compiler_params=cp_red,
        cost_estimate=cost1,
    )(g3, x3, wgT, wxT)
    stats = jnp.sum(stats, axis=0)                         # (Fint, 4)

    m = jnp.asarray(M, f32)
    mean_g = stats[:, 0] / m + bg          # conv bias folded here, not in pass 1
    mean_x = stats[:, 2] / m + bx
    var_g = jnp.maximum(stats[:, 1] / m - (stats[:, 0] / m) ** 2, 0.0)
    var_x = jnp.maximum(stats[:, 3] / m - (stats[:, 2] / m) ** 2, 0.0)

    s_g = jnp.asarray(params["gamma_g"], f32) * jax.lax.rsqrt(var_g + EPS)
    t_g = jnp.asarray(params["beta_g"], f32) - mean_g * s_g
    s_x = jnp.asarray(params["gamma_x"], f32) * jax.lax.rsqrt(var_x + EPS)
    t_x = jnp.asarray(params["beta_x"], f32) - mean_x * s_x

    # BN folded into the 1x1 conv weights; single combined bias for the relu sum.
    wgT_f = wgT * s_g[:, None]
    wxT_f = wxT * s_x[:, None]
    b_comb = ((bg * s_g + t_g) + (bx * s_x + t_x)).reshape(Fint, 1)
    wpsi = jnp.asarray(params["wpsi"], f32).reshape(Fint, 1)
    bpsi = jnp.asarray(params["b_psi"], f32).reshape(())

    # ------------------- pass 2: psi pre-activation + its stats --------------
    cost2 = pl.CostEstimate(
        flops=int(2 * Fint * (Fg + Fl) * M + 5 * Fint * M),
        transcendentals=0,
        bytes_accessed=int(4 * (Fg + Fl + 1) * M))
    psi_pre, pstat = pl.pallas_call(
        _psi_kernel,
        out_shape=(jax.ShapeDtypeStruct((N, 1, HW), f32),
                   jax.ShapeDtypeStruct((gn, 1, 2), f32)),
        grid=grid,
        in_specs=[tile_spec(Fg), tile_spec(Fl),
                  const_spec((Fint, Fg)), const_spec((Fint, Fl)),
                  const_spec((Fint, 1)), const_spec((Fint, 1))],
        out_specs=(tile_spec(1),
                   pl.BlockSpec((1, 1, 2), lambda n, s: (n, 0, 0))),
        scratch_shapes=[pltpu.VMEM((1, 128), f32) for _ in range(2)],
        compiler_params=cp_red,
        cost_estimate=cost2,
    )(g3, x3, wgT_f, wxT_f, b_comb, wpsi)
    pstat = jnp.sum(pstat, axis=0)                          # (1, 2)

    # psi BN (psi bias folded into mean / shift; psi_pre above excludes b_psi).
    mean_p = pstat[0, 0] / m + bpsi
    var_p = jnp.maximum(pstat[0, 1] / m - (pstat[0, 0] / m) ** 2, 0.0)
    s_p = jnp.asarray(params["gamma_psi"], f32).reshape(()) * jax.lax.rsqrt(var_p + EPS)
    t_p = jnp.asarray(params["beta_psi"], f32).reshape(()) - mean_p * s_p
    # sigmoid(s_p*(psi_pre + b_psi) + t_p) == sigmoid(s_p*psi_pre + shift)
    psi_sc = jnp.stack([s_p, t_p + s_p * bpsi]).astype(f32)   # (2,) SMEM scalars

    # ------------------- pass 3: sigmoid gate -------------------------------
    cost3 = pl.CostEstimate(
        flops=int(4 * Fl * M),
        transcendentals=int(M),
        bytes_accessed=int(4 * (2 * Fl + 1) * M))
    out3 = pl.pallas_call(
        _gate_kernel,
        out_shape=jax.ShapeDtypeStruct((N, Fl, HW), x_nchw.dtype),
        grid=grid,
        in_specs=[pl.BlockSpec(memory_space=pltpu.MemorySpace.SMEM),
                  tile_spec(Fl), tile_spec(1)],
        out_specs=tile_spec(Fl),
        compiler_params=cp_par,
        cost_estimate=cost3,
    )(psi_sc, x3, psi_pre)

    return out3.reshape(N, Fl, H, W)


# --------------------------------------------------------------------------- #
# Pure-JAX reference of the same forward (training-mode BN) for validation.
# --------------------------------------------------------------------------- #
def _reference(g_nchw, x_nchw, params):
    def conv1x1(y, w, b):  # y: NCHW, w: (Cin, Cout)
        yt = jnp.transpose(y, (0, 2, 3, 1))
        out = jnp.einsum("nhwc,cd->nhwd", yt, w) + b
        return jnp.transpose(out, (0, 3, 1, 2))

    def bn(y, gamma, beta):  # per-channel over (N, H, W), biased variance
        mu = jnp.mean(y, axis=(0, 2, 3), keepdims=True)
        var = jnp.mean((y - mu) ** 2, axis=(0, 2, 3), keepdims=True)
        gam = jnp.asarray(gamma).reshape(1, -1, 1, 1)
        bet = jnp.asarray(beta).reshape(1, -1, 1, 1)
        return (y - mu) / jnp.sqrt(var + EPS) * gam + bet

    g1 = bn(conv1x1(g_nchw, params["wg"], params["bg"]), params["gamma_g"], params["beta_g"])
    x1 = bn(conv1x1(x_nchw, params["wx"], params["bx"]), params["gamma_x"], params["beta_x"])
    a = jnp.maximum(g1 + x1, 0.0)
    psi = conv1x1(a, params["wpsi"].reshape(-1, 1), jnp.asarray(params["b_psi"]).reshape(1))
    psi = bn(psi, jnp.asarray(params["gamma_psi"]).reshape(1),
             jnp.asarray(params["beta_psi"]).reshape(1))
    psi = jax.nn.sigmoid(psi)
    return x_nchw * psi


def _make_params(key, Fg, Fl, Fint):
    ks = jax.random.split(key, 10)
    return {
        # conv weights stored as (Cin, Cout) for the channels-as-rows matmul
        "wg": jax.random.normal(ks[0], (Fg, Fint), jnp.float32) * 0.2,
        "bg": jax.random.normal(ks[1], (Fint,), jnp.float32) * 0.1,
        "wx": jax.random.normal(ks[2], (Fl, Fint), jnp.float32) * 0.2,
        "bx": jax.random.normal(ks[3], (Fint,), jnp.float32) * 0.1,
        "gamma_g": 1.0 + 0.1 * jax.random.normal(ks[4], (Fint,), jnp.float32),
        "beta_g": 0.1 * jax.random.normal(ks[5], (Fint,), jnp.float32),
        "gamma_x": 1.0 + 0.1 * jax.random.normal(ks[6], (Fint,), jnp.float32),
        "beta_x": 0.1 * jax.random.normal(ks[7], (Fint,), jnp.float32),
        "wpsi": jax.random.normal(ks[8], (Fint,), jnp.float32) * 0.2,
        "b_psi": jnp.float32(0.05),
        "gamma_psi": jnp.float32(1.1),
        "beta_psi": jnp.float32(-0.05),
    }


if __name__ == "__main__":
    key = jax.random.PRNGKey(0)

    # case 1: canonical small shapes (HW multiple of 128 -> lane-dense tiles,
    #         batch blocking bn>1).
    # case 2: HW=24*24=576 (no multiple-of-128 divisor -> full-HW fallback tile
    #         with masked lane tail), Fg != Fl, odd batch.
    cases = [
        dict(N=2, Fg=4, Fl=4, Fint=8, H=16, W=16),
        dict(N=3, Fg=8, Fl=6, Fint=4, H=24, W=24),
    ]
    for idx, c in enumerate(cases):
        kp, kg, kx, key = jax.random.split(key, 4)
        params = _make_params(kp, c["Fg"], c["Fl"], c["Fint"])
        g = jax.random.normal(kg, (c["N"], c["Fg"], c["H"], c["W"]), jnp.float32)
        x = jax.random.normal(kx, (c["N"], c["Fl"], c["H"], c["W"]), jnp.float32)

        out = jax.block_until_ready(attention_gate(g, x, params))
        ref = _reference(g, x, params)
        assert out.shape == x.shape, f"case {idx}: bad shape {out.shape}"
        assert jnp.allclose(out, ref, atol=1e-4, rtol=1e-4), f"case {idx}: mismatch"

    print("KERNEL_OK")
</pallas_src>

<mosaic_0001>
module attributes {stable_mosaic.version = 11 : i64} {
  func.func @_stats_kernel(%arg0: i32, %arg1: i32, %arg2: memref<2x4x256xf32, #tpu.memory_space<vmem>>, %arg3: memref<2x4x256xf32, #tpu.memory_space<vmem>>, %arg4: memref<8x4xf32, #tpu.memory_space<vmem>>, %arg5: memref<8x4xf32, #tpu.memory_space<vmem>>, %arg6: memref<1x8x4xf32, #tpu.memory_space<vmem>>, %arg7: memref<8x128xf32, #tpu.memory_space<vmem>>, %arg8: memref<8x128xf32, #tpu.memory_space<vmem>>, %arg9: memref<8x128xf32, #tpu.memory_space<vmem>>, %arg10: memref<8x128xf32, #tpu.memory_space<vmem>>) attributes {dimension_semantics = [#tpu.dimension_semantics<parallel>, #tpu.dimension_semantics<arbitrary>], iteration_bounds = array<i64: 1, 1>, scalar_prefetch = 0 : i64, scratch_operands = 4 : i64, tpu.core_type = #tpu.core_type<tc>, window_params = [{transform_indices = @transform_0, window_bounds = array<i64: 2, 4, 256>}, {transform_indices = @transform_1, window_bounds = array<i64: 2, 4, 256>}, {pipeline_mode = #tpu.pipeline_mode<synchronous>, transform_indices = @transform_2, window_bounds = array<i64: 8, 4>}, {pipeline_mode = #tpu.pipeline_mode<synchronous>, transform_indices = @transform_3, window_bounds = array<i64: 8, 4>}, {transform_indices = @transform_4, window_bounds = array<i64: 1, 8, 4>}]} {
    %c0_i32 = arith.constant 0 : i32
    %0 = arith.cmpi eq, %arg1, %c0_i32 : i32
    %1 = arith.extui %0 : i1 to i32
    %c0_i32_0 = arith.constant 0 : i32
    %2 = arith.cmpi ne, %1, %c0_i32_0 : i32
    scf.if %2 {
      %cst_56 = arith.constant 0.000000e+00 : f32
      %74 = vector.broadcast %cst_56 : f32 to vector<8x128xf32>
      %c0_57 = arith.constant 0 : index
      %c0_58 = arith.constant 0 : index
      %75 = vector.load %arg7[%c0_57, %c0_58] : memref<8x128xf32, #tpu.memory_space<vmem>>, vector<8x128xf32>
      tpu.vector_store %arg7[%c0_57, %c0_58], %74 {strides = array<i32>} : memref<8x128xf32, #tpu.memory_space<vmem>>, vector<8x128xf32>,
      %cst_59 = arith.constant 0.000000e+00 : f32
      %76 = vector.broadcast %cst_59 : f32 to vector<8x128xf32>
      %c0_60 = arith.constant 0 : index
      %c0_61 = arith.constant 0 : index
      %77 = vector.load %arg8[%c0_60, %c0_61] : memref<8x128xf32, #tpu.memory_space<vmem>>, vector<8x128xf32>
      tpu.vector_store %arg8[%c0_60, %c0_61], %76 {strides = array<i32>} : memref<8x128xf32, #tpu.memory_space<vmem>>, vector<8x128xf32>,
      %cst_62 = arith.constant 0.000000e+00 : f32
      %78 = vector.broadcast %cst_62 : f32 to vector<8x128xf32>
      %c0_63 = arith.constant 0 : index
      %c0_64 = arith.constant 0 : index
      %79 = vector.load %arg9[%c0_63, %c0_64] : memref<8x128xf32, #tpu.memory_space<vmem>>, vector<8x128xf32>
      tpu.vector_store %arg9[%c0_63, %c0_64], %78 {strides = array<i32>} : memref<8x128xf32, #tpu.memory_space<vmem>>, vector<8x128xf32>,
      %cst_65 = arith.constant 0.000000e+00 : f32
      %80 = vector.broadcast %cst_65 : f32 to vector<8x128xf32>
      %c0_66 = arith.constant 0 : index
      %c0_67 = arith.constant 0 : index
      %81 = vector.load %arg10[%c0_66, %c0_67] : memref<8x128xf32, #tpu.memory_space<vmem>>, vector<8x128xf32>
      tpu.vector_store %arg10[%c0_66, %c0_67], %80 {strides = array<i32>} : memref<8x128xf32, #tpu.memory_space<vmem>>, vector<8x128xf32>,
    } else {
    }
    %c0 = arith.constant 0 : index
    %c0_1 = arith.constant 0 : index
    %3 = vector.load %arg4[%c0, %c0_1] : memref<8x4xf32, #tpu.memory_space<vmem>>, vector<8x4xf32>
    %c0_2 = arith.constant 0 : index
    %c0_3 = arith.constant 0 : index
    %c0_4 = arith.constant 0 : index
    %4 = vector.load %arg2[%c0_2, %c0_3, %c0_4] : memref<2x4x256xf32, #tpu.memory_space<vmem>>, vector<1x4x256xf32>
    %5 = vector.shape_cast %4 : vector<1x4x256xf32> to vector<4x256xf32>
    %cst = arith.constant dense<0.000000e+00> : vector<8x256xf32>
    %6 = tpu.matmul %3, %5, %cst {dimension_numbers = #tpu.dot_dimension_numbers<[1], [0], [0], [1], [0, 0, 1, 1], [], []>} : vector<8x4xf32>, vector<4x256xf32>, vector<8x256xf32> -> vector<8x256xf32>
    %c0_5 = arith.constant 0 : index
    %c0_6 = arith.constant 0 : index
    %7 = vector.load %arg5[%c0_5, %c0_6] : memref<8x4xf32, #tpu.memory_space<vmem>>, vector<8x4xf32>
    %c0_7 = arith.constant 0 : index
    %c0_8 = arith.constant 0 : index
    %c0_9 = arith.constant 0 : index
    %8 = vector.load %arg3[%c0_7, %c0_8, %c0_9] : memref<2x4x256xf32, #tpu.memory_space<vmem>>, vector<1x4x256xf32>
    %9 = vector.shape_cast %8 : vector<1x4x256xf32> to vector<4x256xf32>
    %cst_10 = arith.constant dense<0.000000e+00> : vector<8x256xf32>
    %10 = tpu.matmul %7, %9, %cst_10 {dimension_numbers = #tpu.dot_dimension_numbers<[1], [0], [0], [1], [0, 0, 1, 1], [], []>} : vector<8x4xf32>, vector<4x256xf32>, vector<8x256xf32> -> vector<8x256xf32>
    %c0_11 = arith.constant 0 : index
    %c0_12 = arith.constant 0 : index
    %11 = vector.load %arg7[%c0_11, %c0_12] : memref<8x128xf32, #tpu.memory_space<vmem>>, vector<8x128xf32>
    %12 = vector.extract_strided_slice %6 {offsets = [0, 0], sizes = [8, 128], strides = [1, 1]} : vector<8x256xf32> to vector<8x128xf32>
    %13 = vector.extract_strided_slice %6 {offsets = [0, 128], sizes = [8, 128], strides = [1, 1]} : vector<8x256xf32> to vector<8x128xf32>
    %14 = arith.addf %12, %13 : vector<8x128xf32>
    %15 = arith.addf %11, %14 : vector<8x128xf32>
    %c0_13 = arith.constant 0 : index
    %c0_14 = arith.constant 0 : index
    %16 = vector.load %arg7[%c0_13, %c0_14] : memref<8x128xf32, #tpu.memory_space<vmem>>, vector<8x128xf32>
    tpu.vector_store %arg7[%c0_13, %c0_14], %15 {strides = array<i32>} : memref<8x128xf32, #tpu.memory_space<vmem>>, vector<8x128xf32>,
    %c0_15 = arith.constant 0 : index
    %c0_16 = arith.constant 0 : index
    %17 = vector.load %arg8[%c0_15, %c0_16] : memref<8x128xf32, #tpu.memory_space<vmem>>, vector<8x128xf32>
    %18 = arith.mulf %6, %6 : vector<8x256xf32>
    %19 = vector.extract_strided_slice %18 {offsets = [0, 0], sizes = [8, 128], strides = [1, 1]} : vector<8x256xf32> to vector<8x128xf32>
    %20 = vector.extract_strided_slice %18 {offsets = [0, 128], sizes = [8, 128], strides = [1, 1]} : vector<8x256xf32> to vector<8x128xf32>
    %21 = arith.addf %19, %20 : vector<8x128xf32>
    %22 = arith.addf %17, %21 : vector<8x128xf32>
    %c0_17 = arith.constant 0 : index
    %c0_18 = arith.constant 0 : index
    %23 = vector.load %arg8[%c0_17, %c0_18] : memref<8x128xf32, #tpu.memory_space<vmem>>, vector<8x128xf32>
    tpu.vector_store %arg8[%c0_17, %c0_18], %22 {strides = array<i32>} : memref<8x128xf32, #tpu.memory_space<vmem>>, vector<8x128xf32>,
    %c0_19 = arith.constant 0 : index
    %c0_20 = arith.constant 0 : index
    %24 = vector.load %arg9[%c0_19, %c0_20] : memref<8x128xf32, #tpu.memory_space<vmem>>, vector<8x128xf32>
    %25 = vector.extract_strided_slice %10 {offsets = [0, 0], sizes = [8, 128], strides = [1, 1]} : vector<8x256xf32> to vector<8x128xf32>
    %26 = vector.extract_strided_slice %10 {offsets = [0, 128], sizes = [8, 128], strides = [1, 1]} : vector<8x256xf32> to vector<8x128xf32>
    %27 = arith.addf %25, %26 : vector<8x128xf32>
    %28 = arith.addf %24, %27 : vector<8x128xf32>
    %c0_21 = arith.constant 0 : index
    %c0_22 = arith.constant 0 : index
    %29 = vector.load %arg9[%c0_21, %c0_22] : memref<8x128xf32, #tpu.memory_space<vmem>>, vector<8x128xf32>
    tpu.vector_store %arg9[%c0_21, %c0_22], %28 {strides = array<i32>} : memref<8x128xf32, #tpu.memory_space<vmem>>, vector<8x128xf32>,
    %c0_23 = arith.constant 0 : index
    %c0_24 = arith.constant 0 : index
    %30 = vector.load %arg10[%c0_23, %c0_24] : memref<8x128xf32, #tpu.memory_space<vmem>>, vector<8x128xf32>
    %31 = arith.mulf %10, %10 : vector<8x256xf32>
    %32 = vector.extract_strided_slice %31 {offsets = [0, 0], sizes = [8, 128], strides = [1, 1]} : vector<8x256xf32> to vector<8x128xf32>
    %33 = vector.extract_strided_slice %31 {offsets = [0, 128], sizes = [8, 128], strides = [1, 1]} : vector<8x256xf32> to vector<8x128xf32>
    %34 = arith.addf %32, %33 : vector<8x128xf32>
    %35 = arith.addf %30, %34 : vector<8x128xf32>
    %c0_25 = arith.constant 0 : index
    %c0_26 = arith.constant 0 : index
    %36 = vector.load %arg10[%c0_25, %c0_26] : memref<8x128xf32, #tpu.memory_space<vmem>>, vector<8x128xf32>
    tpu.vector_store %arg10[%c0_25, %c0_26], %35 {strides = array<i32>} : memref<8x128xf32, #tpu.memory_space<vmem>>, vector<8x128xf32>,
    %c0_27 = arith.constant 0 : index
    %c0_28 = arith.constant 0 : index
    %37 = vector.load %arg4[%c0_27, %c0_28] : memref<8x4xf32, #tpu.memory_space<vmem>>, vector<8x4xf32>
    %c1 = arith.constant 1 : index
    %c0_29 = arith.constant 0 : index
    %c0_30 = arith.constant 0 : index
    %38 = vector.load %arg2[%c1, %c0_29, %c0_30] : memref<2x4x256xf32, #tpu.memory_space<vmem>>, vector<1x4x256xf32>
    %39 = vector.shape_cast %38 : vector<1x4x256xf32> to vector<4x256xf32>
    %cst_31 = arith.constant dense<0.000000e+00> : vector<8x256xf32>
    %40 = tpu.matmul %37, %39, %cst_31 {dimension_numbers = #tpu.dot_dimension_numbers<[1], [0], [0], [1], [0, 0, 1, 1], [], []>} : vector<8x4xf32>, vector<4x256xf32>, vector<8x256xf32> -> vector<8x256xf32>
    %c0_32 = arith.constant 0 : index
    %c0_33 = arith.constant 0 : index
    %41 = vector.load %arg5[%c0_32, %c0_33] : memref<8x4xf32, #tpu.memory_space<vmem>>, vector<8x4xf32>
    %c1_34 = arith.constant 1 : index
    %c0_35 = arith.constant 0 : index
    %c0_36 = arith.constant 0 : index
    %42 = vector.load %arg3[%c1_34, %c0_35, %c0_36] : memref<2x4x256xf32, #tpu.memory_space<vmem>>, vector<1x4x256xf32>
    %43 = vector.shape_cast %42 : vector<1x4x256xf32> to vector<4x256xf32>
    %cst_37 = arith.constant dense<0.000000e+00> : vector<8x256xf32>
    %44 = tpu.matmul %41, %43, %cst_37 {dimension_numbers = #tpu.dot_dimension_numbers<[1], [0], [0], [1], [0, 0, 1, 1], [], []>} : vector<8x4xf32>, vector<4x256xf32>, vector<8x256xf32> -> vector<8x256xf32>
    %c0_38 = arith.constant 0 : index
    %c0_39 = arith.constant 0 : index
    %45 = vector.load %arg7[%c0_38, %c0_39] : memref<8x128xf32, #tpu.memory_space<vmem>>, vector<8x128xf32>
    %46 = vector.extract_strided_slice %40 {offsets = [0, 0], sizes = [8, 128], strides = [1, 1]} : vector<8x256xf32> to vector<8x128xf32>
    %47 = vector.extract_strided_slice %40 {offsets = [0, 128], sizes = [8, 128], strides = [1, 1]} : vector<8x256xf32> to vector<8x128xf32>
    %48 = arith.addf %46, %47 : vector<8x128xf32>
    %49 = arith.addf %45, %48 : vector<8x128xf32>
    %c0_40 = arith.constant 0 : index
    %c0_41 = arith.constant 0 : index
    %50 = vector.load %arg7[%c0_40, %c0_41] : memref<8x128xf32, #tpu.memory_space<vmem>>, vector<8x128xf32>
    tpu.vector_store %arg7[%c0_40, %c0_41], %49 {strides = array<i32>} : memref<8x128xf32, #tpu.memory_space<vmem>>, vector<8x128xf32>,
    %c0_42 = arith.constant 0 : index
    %c0_43 = arith.constant 0 : index
    %51 = vector.load %arg8[%c0_42, %c0_43] : memref<8x128xf32, #tpu.memory_space<vmem>>, vector<8x128xf32>
    %52 = arith.mulf %40, %40 : vector<8x256xf32>
    %53 = vector.extract_strided_slice %52 {offsets = [0, 0], sizes = [8, 128], strides = [1, 1]} : vector<8x256xf32> to vector<8x128xf32>
    %54 = vector.extract_strided_slice %52 {offsets = [0, 128], sizes = [8, 128], strides = [1, 1]} : vector<8x256xf32> to vector<8x128xf32>
    %55 = arith.addf %53, %54 : vector<8x128xf32>
    %56 = arith.addf %51, %55 : vector<8x128xf32>
    %c0_44 = arith.constant 0 : index
    %c0_45 = arith.constant 0 : index
    %57 = vector.load %arg8[%c0_44, %c0_45] : memref<8x128xf32, #tpu.memory_space<vmem>>, vector<8x128xf32>
    tpu.vector_store %arg8[%c0_44, %c0_45], %56 {strides = array<i32>} : memref<8x128xf32, #tpu.memory_space<vmem>>, vector<8x128xf32>,
    %c0_46 = arith.constant 0 : index
    %c0_47 = arith.constant 0 : index
    %58 = vector.load %arg9[%c0_46, %c0_47] : memref<8x128xf32, #tpu.memory_space<vmem>>, vector<8x128xf32>
    %59 = vector.extract_strided_slice %44 {offsets = [0, 0], sizes = [8, 128], strides = [1, 1]} : vector<8x256xf32> to vector<8x128xf32>
    %60 = vector.extract_strided_slice %44 {offsets = [0, 128], sizes = [8, 128], strides = [1, 1]} : vector<8x256xf32> to vector<8x128xf32>
    %61 = arith.addf %59, %60 : vector<8x128xf32>
    %62 = arith.addf %58, %61 : vector<8x128xf32>
    %c0_48 = arith.constant 0 : index
    %c0_49 = arith.constant 0 : index
    %63 = vector.load %arg9[%c0_48, %c0_49] : memref<8x128xf32, #tpu.memory_space<vmem>>, vector<8x128xf32>
    tpu.vector_store %arg9[%c0_48, %c0_49], %62 {strides = array<i32>} : memref<8x128xf32, #tpu.memory_space<vmem>>, vector<8x128xf32>,
    %c0_50 = arith.constant 0 : index
    %c0_51 = arith.constant 0 : index
    %64 = vector.load %arg10[%c0_50, %c0_51] : memref<8x128xf32, #tpu.memory_space<vmem>>, vector<8x128xf32>
    %65 = arith.mulf %44, %44 : vector<8x256xf32>
    %66 = vector.extract_strided_slice %65 {offsets = [0, 0], sizes = [8, 128], strides = [1, 1]} : vector<8x256xf32> to vector<8x128xf32>
    %67 = vector.extract_strided_slice %65 {offsets = [0, 128], sizes = [8, 128], strides = [1, 1]} : vector<8x256xf32> to vector<8x128xf32>
    %68 = arith.addf %66, %67 : vector<8x128xf32>
    %69 = arith.addf %64, %68 : vector<8x128xf32>
    %c0_52 = arith.constant 0 : index
    %c0_53 = arith.constant 0 : index
    %70 = vector.load %arg10[%c0_52, %c0_53] : memref<8x128xf32, #tpu.memory_space<vmem>>, vector<8x128xf32>
    tpu.vector_store %arg10[%c0_52, %c0_53], %69 {strides = array<i32>} : memref<8x128xf32, #tpu.memory_space<vmem>>, vector<8x128xf32>,
    %c0_i32_54 = arith.constant 0 : i32
    %71 = arith.cmpi eq, %arg1, %c0_i32_54 : i32
    %72 = arith.extui %71 : i1 to i32
    %c0_i32_55 = arith.constant 0 : i32
    %73 = arith.cmpi ne, %72, %c0_i32_55 : i32
    scf.if %73 {
      %c0_56 = arith.constant 0 : index
      %c0_57 = arith.constant 0 : index
      %74 = vector.load %arg7[%c0_56, %c0_57] : memref<8x128xf32, #tpu.memory_space<vmem>>, vector<8x128xf32>
      %cst_58 = arith.constant dense<0.000000e+00> : vector<8xf32>
      %75 = vector.multi_reduction <add>, %74, %cst_58 [1] : vector<8x128xf32> to vector<8xf32>
      %76 = vector.shape_cast %75 : vector<8xf32> to vector<8x1xf32>
      %c0_59 = arith.constant 0 : index
      %c0_60 = arith.constant 0 : index
      %c0_61 = arith.constant 0 : index
      %77 = vector.load %arg6[%c0_59, %c0_60, %c0_61] : memref<1x8x4xf32, #tpu.memory_space<vmem>>, vector<1x8x1xf32>
      %78 = vector.shape_cast %77 : vector<1x8x1xf32> to vector<8x1xf32>
      %79 = vector.shape_cast %76 : vector<8x1xf32> to vector<1x8x1xf32>
      tpu.vector_store %arg6[%c0_59, %c0_60, %c0_61], %79 {strides = array<i32>} : memref<1x8x4xf32, #tpu.memory_space<vmem>>, vector<1x8x1xf32>,
      %c0_62 = arith.constant 0 : index
      %c0_63 = arith.constant 0 : index
      %80 = vector.load %arg8[%c0_62, %c0_63] : memref<8x128xf32, #tpu.memory_space<vmem>>, vector<8x128xf32>
      %cst_64 = arith.constant dense<0.000000e+00> : vector<8xf32>
      %81 = vector.multi_reduction <add>, %80, %cst_64 [1] : vector<8x128xf32> to vector<8xf32>
      %82 = vector.shape_cast %81 : vector<8xf32> to vector<8x1xf32>
      %c0_65 = arith.constant 0 : index
      %c0_66 = arith.constant 0 : index
      %c1_67 = arith.constant 1 : index
      %83 = vector.load %arg6[%c0_65, %c0_66, %c1_67] : memref<1x8x4xf32, #tpu.memory_space<vmem>>, vector<1x8x1xf32>
      %84 = vector.shape_cast %83 : vector<1x8x1xf32> to vector<8x1xf32>
      %85 = vector.shape_cast %82 : vector<8x1xf32> to vector<1x8x1xf32>
      tpu.vector_store %arg6[%c0_65, %c0_66, %c1_67], %85 {strides = array<i32>} : memref<1x8x4xf32, #tpu.memory_space<vmem>>, vector<1x8x1xf32>,
      %c0_68 = arith.constant 0 : index
      %c0_69 = arith.constant 0 : index
      %86 = vector.load %arg9[%c0_68, %c0_69] : memref<8x128xf32, #tpu.memory_space<vmem>>, vector<8x128xf32>
      %cst_70 = arith.constant dense<0.000000e+00> : vector<8xf32>
      %87 = vector.multi_reduction <add>, %86, %cst_70 [1] : vector<8x128xf32> to vector<8xf32>
      %88 = vector.shape_cast %87 : vector<8xf32> to vector<8x1xf32>
      %c0_71 = arith.constant 0 : index
      %c0_72 = arith.constant 0 : index
      %c2 = arith.constant 2 : index
      %89 = vector.load %arg6[%c0_71, %c0_72, %c2] : memref<1x8x4xf32, #tpu.memory_space<vmem>>, vector<1x8x1xf32>
      %90 = vector.shape_cast %89 : vector<1x8x1xf32> to vector<8x1xf32>
      %91 = vector.shape_cast %88 : vector<8x1xf32> to vector<1x8x1xf32>
      tpu.vector_store %arg6[%c0_71, %c0_72, %c2], %91 {strides = array<i32>} : memref<1x8x4xf32, #tpu.memory_space<vmem>>, vector<1x8x1xf32>,
      %c0_73 = arith.constant 0 : index
      %c0_74 = arith.constant 0 : index
      %92 = vector.load %arg10[%c0_73, %c0_74] : memref<8x128xf32, #tpu.memory_space<vmem>>, vector<8x128xf32>
      %cst_75 = arith.constant dense<0.000000e+00> : vector<8xf32>
      %93 = vector.multi_reduction <add>, %92, %cst_75 [1] : vector<8x128xf32> to vector<8xf32>
      %94 = vector.shape_cast %93 : vector<8xf32> to vector<8x1xf32>
      %c0_76 = arith.constant 0 : index
      %c0_77 = arith.constant 0 : index
      %c3 = arith.constant 3 : index
      %95 = vector.load %arg6[%c0_76, %c0_77, %c3] : memref<1x8x4xf32, #tpu.memory_space<vmem>>, vector<1x8x1xf32>
      %96 = vector.shape_cast %95 : vector<1x8x1xf32> to vector<8x1xf32>
      %97 = vector.shape_cast %94 : vector<8x1xf32> to vector<1x8x1xf32>
      tpu.vector_store %arg6[%c0_76, %c0_77, %c3], %97 {strides = array<i32>} : memref<1x8x4xf32, #tpu.memory_space<vmem>>, vector<1x8x1xf32>,
    } else {
    }
    return
  }
  func.func @transform_0(%arg0: i32, %arg1: i32) -> (i32, i32, i32) {
    %c0_i32 = arith.constant 0 : i32
    %c0_i32_0 = arith.constant 0 : i32
    return %arg0, %c0_i32, %arg1 : i32, i32, i32
  }
  func.func @transform_1(%arg0: i32, %arg1: i32) -> (i32, i32, i32) {
    %c0_i32 = arith.constant 0 : i32
    %c0_i32_0 = arith.constant 0 : i32
    return %arg0, %c0_i32, %arg1 : i32, i32, i32
  }
  func.func @transform_2(%arg0: i32, %arg1: i32) -> (i32, i32) {
    %c0_i32 = arith.constant 0 : i32
    %c0_i32_0 = arith.constant 0 : i32
    %c0_i32_1 = arith.constant 0 : i32
    return %c0_i32, %c0_i32_0 : i32, i32
  }
  func.func @transform_3(%arg0: i32, %arg1: i32) -> (i32, i32) {
    %c0_i32 = arith.constant 0 : i32
    %c0_i32_0 = arith.constant 0 : i32
    %c0_i32_1 = arith.constant 0 : i32
    return %c0_i32, %c0_i32_0 : i32, i32
  }
  func.func @transform_4(%arg0: i32, %arg1: i32) -> (i32, i32, i32) {
    %c0_i32 = arith.constant 0 : i32
    %c0_i32_0 = arith.constant 0 : i32
    %c0_i32_1 = arith.constant 0 : i32
    return %arg0, %c0_i32, %c0_i32_0 : i32, i32, i32
  }
}

module attributes {stable_mosaic.version = 11 : i64} {
  func.func @_psi_kernel(%arg0: i32, %arg1: i32, %arg2: memref<2x4x256xf32, #tpu.memory_space<vmem>>, %arg3: memref<2x4x256xf32, #tpu.memory_space<vmem>>, %arg4: memref<8x4xf32, #tpu.memory_space<vmem>>, %arg5: memref<8x4xf32, #tpu.memory_space<vmem>>, %arg6: memref<8x1xf32, #tpu.memory_space<vmem>>, %arg7: memref<8x1xf32, #tpu.memory_space<vmem>>, %arg8: memref<2x1x256xf32, #tpu.memory_space<vmem>>, %arg9: memref<1x1x2xf32, #tpu.memory_space<vmem>>, %arg10: memref<1x128xf32, #tpu.memory_space<vmem>>, %arg11: memref<1x128xf32, #tpu.memory_space<vmem>>) attributes {dimension_semantics = [#tpu.dimension_semantics<parallel>, #tpu.dimension_semantics<arbitrary>], iteration_bounds = array<i64: 1, 1>, scalar_prefetch = 0 : i64, scratch_operands = 2 : i64, tpu.core_type = #tpu.core_type<tc>, window_params = [{transform_indices = @transform_0, window_bounds = array<i64: 2, 4, 256>}, {transform_indices = @transform_1, window_bounds = array<i64: 2, 4, 256>}, {pipeline_mode = #tpu.pipeline_mode<synchronous>, transform_indices = @transform_2, window_bounds = array<i64: 8, 4>}, {pipeline_mode = #tpu.pipeline_mode<synchronous>, transform_indices = @transform_3, window_bounds = array<i64: 8, 4>}, {pipeline_mode = #tpu.pipeline_mode<synchronous>, transform_indices = @transform_4, window_bounds = array<i64: 8, 1>}, {pipeline_mode = #tpu.pipeline_mode<synchronous>, transform_indices = @transform_5, window_bounds = array<i64: 8, 1>}, {transform_indices = @transform_6, window_bounds = array<i64: 2, 1, 256>}, {transform_indices = @transform_7, window_bounds = array<i64: 1, 1, 2>}]} {
    %c0_i32 = arith.constant 0 : i32
    %0 = arith.cmpi eq, %arg1, %c0_i32 : i32
    %1 = arith.extui %0 : i1 to i32
    %c0_i32_0 = arith.constant 0 : i32
    %2 = arith.cmpi ne, %1, %c0_i32_0 : i32
    scf.if %2 {
      %cst_58 = arith.constant 0.000000e+00 : f32
      %76 = vector.broadcast %cst_58 : f32 to vector<1x128xf32>
      %c0_59 = arith.constant 0 : index
      %c0_60 = arith.constant 0 : index
      %77 = vector.load %arg10[%c0_59, %c0_60] : memref<1x128xf32, #tpu.memory_space<vmem>>, vector<1x128xf32>
      tpu.vector_store %arg10[%c0_59, %c0_60], %76 {strides = array<i32>} : memref<1x128xf32, #tpu.memory_space<vmem>>, vector<1x128xf32>,
      %cst_61 = arith.constant 0.000000e+00 : f32
      %78 = vector.broadcast %cst_61 : f32 to vector<1x128xf32>
      %c0_62 = arith.constant 0 : index
      %c0_63 = arith.constant 0 : index
      %79 = vector.load %arg11[%c0_62, %c0_63] : memref<1x128xf32, #tpu.memory_space<vmem>>, vector<1x128xf32>
      tpu.vector_store %arg11[%c0_62, %c0_63], %78 {strides = array<i32>} : memref<1x128xf32, #tpu.memory_space<vmem>>, vector<1x128xf32>,
    } else {
    }
    %c0 = arith.constant 0 : index
    %c0_1 = arith.constant 0 : index
    %3 = vector.load %arg4[%c0, %c0_1] : memref<8x4xf32, #tpu.memory_space<vmem>>, vector<8x4xf32>
    %c0_2 = arith.constant 0 : index
    %c0_3 = arith.constant 0 : index
    %c0_4 = arith.constant 0 : index
    %4 = vector.load %arg2[%c0_2, %c0_3, %c0_4] : memref<2x4x256xf32, #tpu.memory_space<vmem>>, vector<1x4x256xf32>
    %5 = vector.shape_cast %4 : vector<1x4x256xf32> to vector<4x256xf32>
    %cst = arith.constant dense<0.000000e+00> : vector<8x256xf32>
    %6 = tpu.matmul %3, %5, %cst {dimension_numbers = #tpu.dot_dimension_numbers<[1], [0], [0], [1], [0, 0, 1, 1], [], []>} : vector<8x4xf32>, vector<4x256xf32>, vector<8x256xf32> -> vector<8x256xf32>
    %c0_5 = arith.constant 0 : index
    %c0_6 = arith.constant 0 : index
    %7 = vector.load %arg5[%c0_5, %c0_6] : memref<8x4xf32, #tpu.memory_space<vmem>>, vector<8x4xf32>
    %c0_7 = arith.constant 0 : index
    %c0_8 = arith.constant 0 : index
    %c0_9 = arith.constant 0 : index
    %8 = vector.load %arg3[%c0_7, %c0_8, %c0_9] : memref<2x4x256xf32, #tpu.memory_space<vmem>>, vector<1x4x256xf32>
    %9 = vector.shape_cast %8 : vector<1x4x256xf32> to vector<4x256xf32>
    %cst_10 = arith.constant dense<0.000000e+00> : vector<8x256xf32>
    %10 = tpu.matmul %7, %9, %cst_10 {dimension_numbers = #tpu.dot_dimension_numbers<[1], [0], [0], [1], [0, 0, 1, 1], [], []>} : vector<8x4xf32>, vector<4x256xf32>, vector<8x256xf32> -> vector<8x256xf32>
    %11 = arith.addf %6, %10 : vector<8x256xf32>
    %c0_11 = arith.constant 0 : index
    %c0_12 = arith.constant 0 : index
    %12 = vector.load %arg6[%c0_11, %c0_12] : memref<8x1xf32, #tpu.memory_space<vmem>>, vector<8x1xf32>
    %13 = vector.broadcast %12 : vector<8x1xf32> to vector<8x256xf32>
    %14 = arith.addf %11, %13 : vector<8x256xf32>
    %cst_13 = arith.constant 0.000000e+00 : f32
    %15 = vector.broadcast %cst_13 : f32 to vector<8x256xf32>
    %16 = arith.maximumf %14, %15 : vector<8x256xf32>
    %c0_14 = arith.constant 0 : index
    %c0_15 = arith.constant 0 : index
    %17 = vector.load %arg7[%c0_14, %c0_15] : memref<8x1xf32, #tpu.memory_space<vmem>>, vector<8x1xf32>
    %18 = vector.broadcast %17 : vector<8x1xf32> to vector<8x256xf32>
    %19 = arith.mulf %16, %18 : vector<8x256xf32>
    %cst_16 = arith.constant dense<0.000000e+00> : vector<256xf32>
    %20 = vector.multi_reduction <add>, %19, %cst_16 [0] : vector<8x256xf32> to vector<256xf32>
    %21 = vector.shape_cast %20 : vector<256xf32> to vector<1x256xf32>
    %c0_17 = arith.constant 0 : index
    %c0_18 = arith.constant 0 : index
    %c0_19 = arith.constant 0 : index
    %22 = vector.load %arg8[%c0_17, %c0_18, %c0_19] : memref<2x1x256xf32, #tpu.memory_space<vmem>>, vector<1x1x256xf32>
    %23 = vector.shape_cast %22 : vector<1x1x256xf32> to vector<1x256xf32>
    %24 = vector.shape_cast %21 : vector<1x256xf32> to vector<1x1x256xf32>
    tpu.vector_store %arg8[%c0_17, %c0_18, %c0_19], %24 {strides = array<i32>} : memref<2x1x256xf32, #tpu.memory_space<vmem>>, vector<1x1x256xf32>,
    %c0_20 = arith.constant 0 : index
    %c0_21 = arith.constant 0 : index
    %25 = vector.load %arg10[%c0_20, %c0_21] : memref<1x128xf32, #tpu.memory_space<vmem>>, vector<1x128xf32>
    %26 = vector.extract_strided_slice %21 {offsets = [0, 0], sizes = [1, 128], strides = [1, 1]} : vector<1x256xf32> to vector<1x128xf32>
    %27 = vector.extract_strided_slice %21 {offsets = [0, 128], sizes = [1, 128], strides = [1, 1]} : vector<1x256xf32> to vector<1x128xf32>
    %28 = arith.addf %26, %27 : vector<1x128xf32>
    %29 = arith.addf %25, %28 : vector<1x128xf32>
    %c0_22 = arith.constant 0 : index
    %c0_23 = arith.constant 0 : index
    %30 = vector.load %arg10[%c0_22, %c0_23] : memref<1x128xf32, #tpu.memory_space<vmem>>, vector<1x128xf32>
    tpu.vector_store %arg10[%c0_22, %c0_23], %29 {strides = array<i32>} : memref<1x128xf32, #tpu.memory_space<vmem>>, vector<1x128xf32>,
    %c0_24 = arith.constant 0 : index
    %c0_25 = arith.constant 0 : index
    %31 = vector.load %arg11[%c0_24, %c0_25] : memref<1x128xf32, #tpu.memory_space<vmem>>, vector<1x128xf32>
    %32 = arith.mulf %21, %21 : vector<1x256xf32>
    %33 = vector.extract_strided_slice %32 {offsets = [0, 0], sizes = [1, 128], strides = [1, 1]} : vector<1x256xf32> to vector<1x128xf32>
    %34 = vector.extract_strided_slice %32 {offsets = [0, 128], sizes = [1, 128], strides = [1, 1]} : vector<1x256xf32> to vector<1x128xf32>
    %35 = arith.addf %33, %34 : vector<1x128xf32>
    %36 = arith.addf %31, %35 : vector<1x128xf32>
    %c0_26 = arith.constant 0 : index
    %c0_27 = arith.constant 0 : index
    %37 = vector.load %arg11[%c0_26, %c0_27] : memref<1x128xf32, #tpu.memory_space<vmem>>, vector<1x128xf32>
    tpu.vector_store %arg11[%c0_26, %c0_27], %36 {strides = array<i32>} : memref<1x128xf32, #tpu.memory_space<vmem>>, vector<1x128xf32>,
    %c0_28 = arith.constant 0 : index
    %c0_29 = arith.constant 0 : index
    %38 = vector.load %arg4[%c0_28, %c0_29] : memref<8x4xf32, #tpu.memory_space<vmem>>, vector<8x4xf32>
    %c1 = arith.constant 1 : index
    %c0_30 = arith.constant 0 : index
    %c0_31 = arith.constant 0 : index
    %39 = vector.load %arg2[%c1, %c0_30, %c0_31] : memref<2x4x256xf32, #tpu.memory_space<vmem>>, vector<1x4x256xf32>
    %40 = vector.shape_cast %39 : vector<1x4x256xf32> to vector<4x256xf32>
    %cst_32 = arith.constant dense<0.000000e+00> : vector<8x256xf32>
    %41 = tpu.matmul %38, %40, %cst_32 {dimension_numbers = #tpu.dot_dimension_numbers<[1], [0], [0], [1], [0, 0, 1, 1], [], []>} : vector<8x4xf32>, vector<4x256xf32>, vector<8x256xf32> -> vector<8x256xf32>
    %c0_33 = arith.constant 0 : index
    %c0_34 = arith.constant 0 : index
    %42 = vector.load %arg5[%c0_33, %c0_34] : memref<8x4xf32, #tpu.memory_space<vmem>>, vector<8x4xf32>
    %c1_35 = arith.constant 1 : index
    %c0_36 = arith.constant 0 : index
    %c0_37 = arith.constant 0 : index
    %43 = vector.load %arg3[%c1_35, %c0_36, %c0_37] : memref<2x4x256xf32, #tpu.memory_space<vmem>>, vector<1x4x256xf32>
    %44 = vector.shape_cast %43 : vector<1x4x256xf32> to vector<4x256xf32>
    %cst_38 = arith.constant dense<0.000000e+00> : vector<8x256xf32>
    %45 = tpu.matmul %42, %44, %cst_38 {dimension_numbers = #tpu.dot_dimension_numbers<[1], [0], [0], [1], [0, 0, 1, 1], [], []>} : vector<8x4xf32>, vector<4x256xf32>, vector<8x256xf32> -> vector<8x256xf32>
    %46 = arith.addf %41, %45 : vector<8x256xf32>
    %c0_39 = arith.constant 0 : index
    %c0_40 = arith.constant 0 : index
    %47 = vector.load %arg6[%c0_39, %c0_40] : memref<8x1xf32, #tpu.memory_space<vmem>>, vector<8x1xf32>
    %48 = vector.broadcast %47 : vector<8x1xf32> to vector<8x256xf32>
    %49 = arith.addf %46, %48 : vector<8x256xf32>
    %cst_41 = arith.constant 0.000000e+00 : f32
    %50 = vector.broadcast %cst_41 : f32 to vector<8x256xf32>
    %51 = arith.maximumf %49, %50 : vector<8x256xf32>
    %c0_42 = arith.constant 0 : index
    %c0_43 = arith.constant 0 : index
    %52 = vector.load %arg7[%c0_42, %c0_43] : memref<8x1xf32, #tpu.memory_space<vmem>>, vector<8x1xf32>
    %53 = vector.broadcast %52 : vector<8x1xf32> to vector<8x256xf32>
    %54 = arith.mulf %51, %53 : vector<8x256xf32>
    %cst_44 = arith.constant dense<0.000000e+00> : vector<256xf32>
    %55 = vector.multi_reduction <add>, %54, %cst_44 [0] : vector<8x256xf32> to vector<256xf32>
    %56 = vector.shape_cast %55 : vector<256xf32> to vector<1x256xf32>
    %c1_45 = arith.constant 1 : index
    %c0_46 = arith.constant 0 : index
    %c0_47 = arith.constant 0 : index
    %57 = vector.load %arg8[%c1_45, %c0_46, %c0_47] : memref<2x1x256xf32, #tpu.memory_space<vmem>>, vector<1x1x256xf32>
    %58 = vector.shape_cast %57 : vector<1x1x256xf32> to vector<1x256xf32>
    %59 = vector.shape_cast %56 : vector<1x256xf32> to vector<1x1x256xf32>
    tpu.vector_store %arg8[%c1_45, %c0_46, %c0_47], %59 {strides = array<i32>} : memref<2x1x256xf32, #tpu.memory_space<vmem>>, vector<1x1x256xf32>,
    %c0_48 = arith.constant 0 : index
    %c0_49 = arith.constant 0 : index
    %60 = vector.load %arg10[%c0_48, %c0_49] : memref<1x128xf32, #tpu.memory_space<vmem>>, vector<1x128xf32>
    %61 = vector.extract_strided_slice %56 {offsets = [0, 0], sizes = [1, 128], strides = [1, 1]} : vector<1x256xf32> to vector<1x128xf32>
    %62 = vector.extract_strided_slice %56 {offsets = [0, 128], sizes = [1, 128], strides = [1, 1]} : vector<1x256xf32> to vector<1x128xf32>
    %63 = arith.addf %61, %62 : vector<1x128xf32>
    %64 = arith.addf %60, %63 : vector<1x128xf32>
    %c0_50 = arith.constant 0 : index
    %c0_51 = arith.constant 0 : index
    %65 = vector.load %arg10[%c0_50, %c0_51] : memref<1x128xf32, #tpu.memory_space<vmem>>, vector<1x128xf32>
    tpu.vector_store %arg10[%c0_50, %c0_51], %64 {strides = array<i32>} : memref<1x128xf32, #tpu.memory_space<vmem>>, vector<1x128xf32>,
    %c0_52 = arith.constant 0 : index
    %c0_53 = arith.constant 0 : index
    %66 = vector.load %arg11[%c0_52, %c0_53] : memref<1x128xf32, #tpu.memory_space<vmem>>, vector<1x128xf32>
    %67 = arith.mulf %56, %56 : vector<1x256xf32>
    %68 = vector.extract_strided_slice %67 {offsets = [0, 0], sizes = [1, 128], strides = [1, 1]} : vector<1x256xf32> to vector<1x128xf32>
    %69 = vector.extract_strided_slice %67 {offsets = [0, 128], sizes = [1, 128], strides = [1, 1]} : vector<1x256xf32> to vector<1x128xf32>
    %70 = arith.addf %68, %69 : vector<1x128xf32>
    %71 = arith.addf %66, %70 : vector<1x128xf32>
    %c0_54 = arith.constant 0 : index
    %c0_55 = arith.constant 0 : index
    %72 = vector.load %arg11[%c0_54, %c0_55] : memref<1x128xf32, #tpu.memory_space<vmem>>, vector<1x128xf32>
    tpu.vector_store %arg11[%c0_54, %c0_55], %71 {strides = array<i32>} : memref<1x128xf32, #tpu.memory_space<vmem>>, vector<1x128xf32>,
    %c0_i32_56 = arith.constant 0 : i32
    %73 = arith.cmpi eq, %arg1, %c0_i32_56 : i32
    %74 = arith.extui %73 : i1 to i32
    %c0_i32_57 = arith.constant 0 : i32
    %75 = arith.cmpi ne, %74, %c0_i32_57 : i32
    scf.if %75 {
      %c0_58 = arith.constant 0 : index
      %c0_59 = arith.constant 0 : index
      %76 = vector.load %arg10[%c0_58, %c0_59] : memref<1x128xf32, #tpu.memory_space<vmem>>, vector<1x128xf32>
      %cst_60 = arith.constant dense<0.000000e+00> : vector<1xf32>
      %77 = vector.multi_reduction <add>, %76, %cst_60 [1] : vector<1x128xf32> to vector<1xf32>
      %78 = vector.shape_cast %77 : vector<1xf32> to vector<1x1xf32>
      %c0_61 = arith.constant 0 : index
      %c0_62 = arith.constant 0 : index
      %c0_63 = arith.constant 0 : index
      %79 = vector.load %arg9[%c0_61, %c0_62, %c0_63] : memref<1x1x2xf32, #tpu.memory_space<vmem>>, vector<1x1x1xf32>
      %80 = vector.shape_cast %79 : vector<1x1x1xf32> to vector<1x1xf32>
      %81 = vector.shape_cast %78 : vector<1x1xf32> to vector<1x1x1xf32>
      tpu.vector_store %arg9[%c0_61, %c0_62, %c0_63], %81 {strides = array<i32>} : memref<1x1x2xf32, #tpu.memory_space<vmem>>, vector<1x1x1xf32>,
      %c0_64 = arith.constant 0 : index
      %c0_65 = arith.constant 0 : index
      %82 = vector.load %arg11[%c0_64, %c0_65] : memref<1x128xf32, #tpu.memory_space<vmem>>, vector<1x128xf32>
      %cst_66 = arith.constant dense<0.000000e+00> : vector<1xf32>
      %83 = vector.multi_reduction <add>, %82, %cst_66 [1] : vector<1x128xf32> to vector<1xf32>
      %84 = vector.shape_cast %83 : vector<1xf32> to vector<1x1xf32>
      %c0_67 = arith.constant 0 : index
      %c0_68 = arith.constant 0 : index
      %c1_69 = arith.constant 1 : index
      %85 = vector.load %arg9[%c0_67, %c0_68, %c1_69] : memref<1x1x2xf32, #tpu.memory_space<vmem>>, vector<1x1x1xf32>
      %86 = vector.shape_cast %85 : vector<1x1x1xf32> to vector<1x1xf32>
      %87 = vector.shape_cast %84 : vector<1x1xf32> to vector<1x1x1xf32>
      tpu.vector_store %arg9[%c0_67, %c0_68, %c1_69], %87 {strides = array<i32>} : memref<1x1x2xf32, #tpu.memory_space<vmem>>, vector<1x1x1xf32>,
    } else {
    }
    return
  }
  func.func @transform_0(%arg0: i32, %arg1: i32) -> (i32, i32, i32) {
    %c0_i32 = arith.constant 0 : i32
    %c0_i32_0 = arith.constant 0 : i32
    return %arg0, %c0_i32, %arg1 : i32, i32, i32
  }
  func.func @transform_1(%arg0: i32, %arg1: i32) -> (i32, i32, i32) {
    %c0_i32 = arith.constant 0 : i32
    %c0_i32_0 = arith.constant 0 : i32
    return %arg0, %c0_i32, %arg1 : i32, i32, i32
  }
  func.func @transform_2(%arg0: i32, %arg1: i32) -> (i32, i32) {
    %c0_i32 = arith.constant 0 : i32
    %c0_i32_0 = arith.constant 0 : i32
    %c0_i32_1 = arith.constant 0 : i32
    return %c0_i32, %c0_i32_0 : i32, i32
  }
  func.func @transform_3(%arg0: i32, %arg1: i32) -> (i32, i32) {
    %c0_i32 = arith.constant 0 : i32
    %c0_i32_0 = arith.constant 0 : i32
    %c0_i32_1 = arith.constant 0 : i32
    return %c0_i32, %c0_i32_0 : i32, i32
  }
  func.func @transform_4(%arg0: i32, %arg1: i32) -> (i32, i32) {
    %c0_i32 = arith.constant 0 : i32
    %c0_i32_0 = arith.constant 0 : i32
    %c0_i32_1 = arith.constant 0 : i32
    return %c0_i32, %c0_i32_0 : i32, i32
  }
  func.func @transform_5(%arg0: i32, %arg1: i32) -> (i32, i32) {
    %c0_i32 = arith.constant 0 : i32
    %c0_i32_0 = arith.constant 0 : i32
    %c0_i32_1 = arith.constant 0 : i32
    return %c0_i32, %c0_i32_0 : i32, i32
  }
  func.func @transform_6(%arg0: i32, %arg1: i32) -> (i32, i32, i32) {
    %c0_i32 = arith.constant 0 : i32
    %c0_i32_0 = arith.constant 0 : i32
    return %arg0, %c0_i32, %arg1 : i32, i32, i32
  }
  func.func @transform_7(%arg0: i32, %arg1: i32) -> (i32, i32, i32) {
    %c0_i32 = arith.constant 0 : i32
    %c0_i32_0 = arith.constant 0 : i32
    %c0_i32_1 = arith.constant 0 : i32
    return %arg0, %c0_i32, %c0_i32_0 : i32, i32, i32
  }
}

module attributes {stable_mosaic.version = 11 : i64} {
  func.func @_gate_kernel(%arg0: i32, %arg1: i32, %arg2: memref<2xf32, #tpu.memory_space<smem>>, %arg3: memref<2x4x256xf32, #tpu.memory_space<vmem>>, %arg4: memref<2x1x256xf32, #tpu.memory_space<vmem>>, %arg5: memref<2x4x256xf32, #tpu.memory_space<vmem>>) attributes {dimension_semantics = [#tpu.dimension_semantics<parallel>, #tpu.dimension_semantics<parallel>], iteration_bounds = array<i64: 1, 1>, scalar_prefetch = 0 : i64, scratch_operands = 0 : i64, tpu.core_type = #tpu.core_type<tc>, window_params = [{transform_indices = @transform_0, window_bounds = array<i64: 2>}, {transform_indices = @transform_1, window_bounds = array<i64: 2, 4, 256>}, {transform_indices = @transform_2, window_bounds = array<i64: 2, 1, 256>}, {transform_indices = @transform_3, window_bounds = array<i64: 2, 4, 256>}]} {
    %c0 = arith.constant 0 : index
    %0 = memref.load %arg2[%c0] : memref<2xf32, #tpu.memory_space<smem>>
    %c1 = arith.constant 1 : index
    %1 = memref.load %arg2[%c1] : memref<2xf32, #tpu.memory_space<smem>>
    %c0_0 = arith.constant 0 : index
    %c0_1 = arith.constant 0 : index
    %c0_2 = arith.constant 0 : index
    %2 = vector.load %arg4[%c0_0, %c0_1, %c0_2] : memref<2x1x256xf32, #tpu.memory_space<vmem>>, vector<1x1x256xf32>
    %3 = vector.shape_cast %2 : vector<1x1x256xf32> to vector<1x256xf32>
    %4 = vector.broadcast %0 : f32 to vector<1x256xf32>
    %5 = arith.mulf %3, %4 : vector<1x256xf32>
    %6 = vector.broadcast %1 : f32 to vector<1x256xf32>
    %7 = arith.addf %5, %6 : vector<1x256xf32>
    %8 = arith.negf %7 : vector<1x256xf32>
    %9 = math.exp %8 : vector<1x256xf32>
    %cst = arith.constant 1.000000e+00 : f32
    %10 = vector.broadcast %cst : f32 to vector<1x256xf32>
    %11 = arith.addf %10, %9 : vector<1x256xf32>
    %12 = arith.divf %10, %11 : vector<1x256xf32>
    %c0_3 = arith.constant 0 : index
    %c0_4 = arith.constant 0 : index
    %c0_5 = arith.constant 0 : index
    %13 = vector.load %arg3[%c0_3, %c0_4, %c0_5] : memref<2x4x256xf32, #tpu.memory_space<vmem>>, vector<1x4x256xf32>
    %14 = vector.shape_cast %13 : vector<1x4x256xf32> to vector<4x256xf32>
    %15 = vector.broadcast %12 : vector<1x256xf32> to vector<4x256xf32>
    %16 = arith.mulf %14, %15 : vector<4x256xf32>
    %c0_6 = arith.constant 0 : index
    %c0_7 = arith.constant 0 : index
    %c0_8 = arith.constant 0 : index
    %17 = vector.load %arg5[%c0_6, %c0_7, %c0_8] : memref<2x4x256xf32, #tpu.memory_space<vmem>>, vector<1x4x256xf32>
    %18 = vector.shape_cast %17 : vector<1x4x256xf32> to vector<4x256xf32>
    %19 = vector.shape_cast %16 : vector<4x256xf32> to vector<1x4x256xf32>
    tpu.vector_store %arg5[%c0_6, %c0_7, %c0_8], %19 {strides = array<i32>} : memref<2x4x256xf32, #tpu.memory_space<vmem>>, vector<1x4x256xf32>,
    %c1_9 = arith.constant 1 : index
    %c0_10 = arith.constant 0 : index
    %c0_11 = arith.constant 0 : index
    %20 = vector.load %arg4[%c1_9, %c0_10, %c0_11] : memref<2x1x256xf32, #tpu.memory_space<vmem>>, vector<1x1x256xf32>
    %21 = vector.shape_cast %20 : vector<1x1x256xf32> to vector<1x256xf32>
    %22 = vector.broadcast %0 : f32 to vector<1x256xf32>
    %23 = arith.mulf %21, %22 : vector<1x256xf32>
    %24 = vector.broadcast %1 : f32 to vector<1x256xf32>
    %25 = arith.addf %23, %24 : vector<1x256xf32>
    %26 = arith.negf %25 : vector<1x256xf32>
    %27 = math.exp %26 : vector<1x256xf32>
    %cst_12 = arith.constant 1.000000e+00 : f32
    %28 = vector.broadcast %cst_12 : f32 to vector<1x256xf32>
    %29 = arith.addf %28, %27 : vector<1x256xf32>
    %30 = arith.divf %28, %29 : vector<1x256xf32>
    %c1_13 = arith.constant 1 : index
    %c0_14 = arith.constant 0 : index
    %c0_15 = arith.constant 0 : index
    %31 = vector.load %arg3[%c1_13, %c0_14, %c0_15] : memref<2x4x256xf32, #tpu.memory_space<vmem>>, vector<1x4x256xf32>
    %32 = vector.shape_cast %31 : vector<1x4x256xf32> to vector<4x256xf32>
    %33 = vector.broadcast %30 : vector<1x256xf32> to vector<4x256xf32>
    %34 = arith.mulf %32, %33 : vector<4x256xf32>
    %c1_16 = arith.constant 1 : index
    %c0_17 = arith.constant 0 : index
    %c0_18 = arith.constant 0 : index
    %35 = vector.load %arg5[%c1_16, %c0_17, %c0_18] : memref<2x4x256xf32, #tpu.memory_space<vmem>>, vector<1x4x256xf32>
    %36 = vector.shape_cast %35 : vector<1x4x256xf32> to vector<4x256xf32>
    %37 = vector.shape_cast %34 : vector<4x256xf32> to vector<1x4x256xf32>
    tpu.vector_store %arg5[%c1_16, %c0_17, %c0_18], %37 {strides = array<i32>} : memref<2x4x256xf32, #tpu.memory_space<vmem>>, vector<1x4x256xf32>,
    return
  }
  func.func @transform_0(%arg0: i32, %arg1: i32) -> i32 {
    %c0_i32 = arith.constant 0 : i32
    %c0_i32_0 = arith.constant 0 : i32
    return %c0_i32 : i32
  }
  func.func @transform_1(%arg0: i32, %arg1: i32) -> (i32, i32, i32) {
    %c0_i32 = arith.constant 0 : i32
    %c0_i32_0 = arith.constant 0 : i32
    return %arg0, %c0_i32, %arg1 : i32, i32, i32
  }
  func.func @transform_2(%arg0: i32, %arg1: i32) -> (i32, i32, i32) {
    %c0_i32 = arith.constant 0 : i32
    %c0_i32_0 = arith.constant 0 : i32
    return %arg0, %c0_i32, %arg1 : i32, i32, i32
  }
  func.func @transform_3(%arg0: i32, %arg1: i32) -> (i32, i32, i32) {
    %c0_i32 = arith.constant 0 : i32
    %c0_i32_0 = arith.constant 0 : i32
    return %arg0, %c0_i32, %arg1 : i32, i32, i32
  }
}

</mosaic_0001>

<llo_original>
// kernel: attention_gate.5
$region0: #{attention_gate.5}
  #allocation0 [shape = 'u32[]', space=smem, size = 0x4, offset = 0x4, fixed_abs, tag = 'smem constant byte address 0x4 - core index']
  #allocation1 [shape = 'u32[72,128]{1,0:T(1,128)}', space=vmem, size = 0x9000, scoped, tag = 'internal scratch']
  %s0 = inlined_call_operand.vmem [shape: f32[2], index: 0, kind: input, shape index: {}]
  %s1 = inlined_call_operand.vmem [shape: f32[2,4,256], index: 1, kind: input, shape index: {}]
  %s2 = inlined_call_operand.vmem [shape: f32[2,1,256], index: 2, kind: input, shape index: {}]
  %s3 = inlined_call_operand.vmem [shape: f32[2,4,256], index: 3, kind: output, shape index: {}]
  %s4 = sld [smem:[#allocation0]]
  $region26: #{attention_gate.5} parent=0
    _
  %s6 = ssub.s32 1, %s4
  %s7 = scalar_select 0, %s6, %s4
  $region1: #{attention_gate.5} parent=0
    #allocation2 [shape = 'u8[512]{0}', space=smem, size = 0x200, scoped, tag = 'input window, operand 0, single buffered']
    #allocation3 [shape = 's32[1]{0}', space=sflag, size = 0x4, scoped, tag = 'scoped memory for attention_gate.5']
    %8 = vsyncpa [#allocation3], 0
    // Predicated region
    $region2: #{attention_gate.5} parent=1 // pred_check
      _
    $region3: #{attention_gate.5} parent=1 // pred_check_branch
      %10 = sbr.rel (0) target = $region5
    $region4: #{attention_gate.5} parent=1 // pred_region
      %12 = vsyncadd [#allocation3], 0
      %s14 = sshll.u32 %s0, 4
      %s15 = int_to_ptr.vmem [resolvable:$true] %s14
      %17 = dma.vmem_to_smem %s15, 16, [#allocation2], [#allocation3]
    $region5: #{attention_gate.5} parent=1 // pred_fallthru
      _
    // Predicated region
    $region6: #{attention_gate.5} parent=1 // pred_check
      _
    $region7: #{attention_gate.5} parent=1 // pred_check_branch
      %19 = sbr.rel (0) target = $region9
    $region8: #{attention_gate.5} parent=1 // pred_region
      _
    $region9: #{attention_gate.5} parent=1 // pred_fallthru
      _
    // Predicated region
    $region10: #{attention_gate.5} parent=1 // pred_check
      _
    $region11: #{attention_gate.5} parent=1 // pred_check_branch
      %21 = sbr.rel (0) target = $region13
    $region12: #{attention_gate.5} parent=1 // pred_region
      _
    $region13: #{attention_gate.5} parent=1 // pred_fallthru
      _
    // Predicated region
    $region14: #{attention_gate.5} parent=1 // pred_check
      _
    $region15: #{attention_gate.5} parent=1 // pred_check_branch
      %23 = sbr.rel (0) target = $region17
    $region16: #{attention_gate.5} parent=1 // pred_region
      %25 = dma.done [#allocation3], 16
    $region17: #{attention_gate.5} parent=1 // pred_fallthru
      _
    %26 = sfence
    %s27 = sld [smem:[#allocation2]]
    %s28 = sld [smem:[#allocation2 + $0x1]]
    %v29 = vld [vmem:[%s2] sm:$0x3]
    %v30 = vstv %s27
    %v31 = vmul.f32 %v29, %v30
    %v32 = vstv %s28
    %v33 = vadd.f32 %v31, %v32
    %v34 = vxor.u32 %v33, 2147483648
    %v35 = vmul.f32 %v34, 1.442695
    %v36 = vpow.pop %v35
    %v37 = vadd.f32 %v36, 1.0
    %v38 = vrcp.pop %v37
    %v39 = vmul.f32 %v37, %v38
    %v40 = vsub.f32 1.0, %v39
    %v41 = vmul.f32 %v38, %v40
    %v42 = vadd.f32 %v38, %v41
    %vm43 = vweird.f32 %v37
    %vm44 = vweird.f32 %v38
    %vm45 = vmor %vm43, %vm44
    %v46 = vsel %vm45, %v38, %v42
    %v47 = vand.u32 2147483647, %v37
    %vm48 = vcmp.eq.f32.partialorder %v47, 8.507059e+37
    %v49 = vand.u32 %v37, 2147483648
    %v50 = vor.u32 1.1754944e-38, %v49
    %v51 = vsel %vm48, %v50, %v46
    %v52 = vmul.f32 1.0, %v51
    %v53 = vld [vmem:[%s1] sm:$0xff]
    %v55 = vperm.slane %v52, 0
    %v56 = vperm.slane %v52, 1
    %v57 = vrot.slane %v56, 4
    %vm58 = vcmask 1043456
    %v59 = vsel %vm58, %v55, %v57
    %v61 = vmul.f32 %v53, %v59
    %62 = vst [vmem:[%s3] sm:$0xff] %v61
    %s63 = scalar_lea.vmem %s2, 2
    %v64 = vld [vmem:[%s63] sm:$0x3]
    %v65 = vmul.f32 %v64, %v30
    %v66 = vadd.f32 %v65, %v32
    %v67 = vxor.u32 %v66, 2147483648
    %v68 = vmul.f32 %v67, 1.442695
    %v69 = vpow.pop %v68
    %v70 = vadd.f32 %v69, 1.0
    %v71 = vrcp.pop %v70
    %v72 = vmul.f32 %v70, %v71
    %v73 = vsub.f32 1.0, %v72
    %v74 = vmul.f32 %v71, %v73
    %v75 = vadd.f32 %v71, %v74
    %vm76 = vweird.f32 %v70
    %vm77 = vweird.f32 %v71
    %vm78 = vmor %vm76, %vm77
    %v79 = vsel %vm78, %v71, %v75
    %v80 = vand.u32 2147483647, %v70
    %vm81 = vcmp.eq.f32.partialorder %v80, 8.507059e+37
    %v82 = vand.u32 %v70, 2147483648
    %v83 = vor.u32 1.1754944e-38, %v82
    %v84 = vsel %vm81, %v83, %v79
    %v85 = vmul.f32 1.0, %v84
    %s86 = scalar_lea.vmem %s1, 8
    %v87 = vld [vmem:[%s86] sm:$0xff]
    %v89 = vperm.slane %v85, 0
    %v90 = vperm.slane %v85, 1
    %v91 = vrot.slane %v90, 4
    %v92 = vsel %vm58, %v89, %v91
    %v94 = vmul.f32 %v87, %v92
    %s95 = scalar_lea.vmem %s3, 8
    %96 = vst [vmem:[%s95] sm:$0xff] %v94
    // Predicated region
    $region18: #{attention_gate.5} parent=1 // pred_check
      _
    $region19: #{attention_gate.5} parent=1 // pred_check_branch
      %98 = sbr.rel (0) target = $region21
    $region20: #{attention_gate.5} parent=1 // pred_region
      _
    $region21: #{attention_gate.5} parent=1 // pred_fallthru
      _
    // Predicated region
    $region22: #{attention_gate.5} parent=1 // pred_check
      _
    $region23: #{attention_gate.5} parent=1 // pred_check_branch
      %100 = sbr.rel (0) target = $region25
    $region24: #{attention_gate.5} parent=1 // pred_region
      _
    $region25: #{attention_gate.5} parent=1 // pred_fallthru
      _
    %101 = vsyncpa [#allocation3], 1

// kernel: attention_gate.3
$region0: #{attention_gate.3}
  #allocation0 [shape = 'u32[]', space=smem, size = 0x4, offset = 0x4, fixed_abs, tag = 'smem constant byte address 0x4 - core index']
  #allocation1 [shape = 'u32[72,128]{1,0:T(1,128)}', space=vmem, size = 0x9000, scoped, tag = 'internal scratch']
  #allocation2 [shape = 'f32[8,128]{1,0:T(8,128)}', space=vmem, size = 0x1000, scoped, tag = 'scratch operand']
  #allocation3 [shape = 'f32[8,128]{1,0:T(8,128)}', space=vmem, size = 0x1000, scoped, tag = 'scratch operand']
  #allocation4 [shape = 'f32[8,128]{1,0:T(8,128)}', space=vmem, size = 0x1000, scoped, tag = 'scratch operand']
  #allocation5 [shape = 'f32[8,128]{1,0:T(8,128)}', space=vmem, size = 0x1000, scoped, tag = 'scratch operand']
  %s0 = inlined_call_operand.vmem [shape: f32[2,4,256], index: 0, kind: input, shape index: {}]
  %s1 = inlined_call_operand.vmem [shape: f32[2,4,256], index: 1, kind: input, shape index: {}]
  %s2 = inlined_call_operand.vmem [shape: f32[8,4], index: 2, kind: input, shape index: {}]
  %s3 = inlined_call_operand.vmem [shape: f32[8,4], index: 3, kind: input, shape index: {}]
  %s4 = inlined_call_operand.vmem [shape: f32[1,8,4], index: 4, kind: output, shape index: {}]
  %s5 = sld [smem:[#allocation0]]
  $region34: #{attention_gate.3} parent=0
    _
  %s7 = ssub.s32 1, %s5
  %s8 = scalar_select 0, %s7, %s5
  // Predicated region
  $region2: #{attention_gate.3} parent=0 // pred_check
    _
  $region3: #{attention_gate.3} parent=0 // pred_check_branch
    %10 = sbr.rel (0) target = $region5
  $region4: #{attention_gate.3} parent=0 // pred_region
    _
  $region5: #{attention_gate.3} parent=0 // pred_fallthru
    _
  // Predicated region
  $region6: #{attention_gate.3} parent=0 // pred_check
    _
  $region7: #{attention_gate.3} parent=0 // pred_check_branch
    %12 = sbr.rel (0) target = $region9
  $region8: #{attention_gate.3} parent=0 // pred_region
    _
  $region9: #{attention_gate.3} parent=0 // pred_fallthru
    _
  // Predicated region
  $region10: #{attention_gate.3} parent=0 // pred_check
    _
  $region11: #{attention_gate.3} parent=0 // pred_check_branch
    %14 = sbr.rel (0) target = $region13
  $region12: #{attention_gate.3} parent=0 // pred_region
    _
  $region13: #{attention_gate.3} parent=0 // pred_fallthru
    _
  // Predicated region
  $region14: #{attention_gate.3} parent=0 // pred_check
    _
  $region15: #{attention_gate.3} parent=0 // pred_check_branch
    %16 = sbr.rel (0) target = $region17
  $region16: #{attention_gate.3} parent=0 // pred_region
    _
  $region17: #{attention_gate.3} parent=0 // pred_fallthru
    _
  %p17 = scmp.eq.s32.totalorder 0, 0
  // Predicated region
  $region18: #{attention_gate.3} parent=0 // pred_check
    %p18 = pneg %p17
  $region19: #{attention_gate.3} parent=0 // pred_check_branch
    %20 = sbr.rel (%p18) target = $region21
  $region20: #{attention_gate.3} parent=0 // pred_region
    %21 = vst [vmem:[#allocation2] sm:$0xff] 0.0
    %22 = vst [vmem:[#allocation3] sm:$0xff] 0.0
    %23 = vst [vmem:[#allocation4] sm:$0xff] 0.0
    %24 = vst [vmem:[#allocation5] sm:$0xff] 0.0
  $region21: #{attention_gate.3} parent=0 // pred_fallthru
    _
  %v25 = vld [vmem:[%s2] sm:$0xff]
  %v26 = vld [vmem:[%s0] sm:$0xff]
  %28 = vst [vmem:[#allocation1] ss:$2 sm:$0xff] %v26
  %v29 = vld.sshfl [vmem:[#allocation1] sm:$0xff pattern:$0x75316420]
  %v30 = vld.sshfl [vmem:[#allocation1 + $0x8] sm:$0xff pattern:$0x75316420]
  %vm31 = vcmask 31744
  %v33 = vsel %vm31, %v25, 0
  %vm35 = vcmask 1043456
  %v36 = vsel %vm35, %v29, 0
  %v38 = vsel %vm35, %v30, 0
  %40 = vmatpush.msra.mxu0 0.0
  %41 = vmatpush.msra.mxu0 0.0
  %42 = vmatpush.msra.mxu0 0.0
  %43 = vmatpush.msra.mxu0 0.0
  %44 = vmatpush.msra.mxu0 0.0
  %45 = vmatpush.msra.mxu0 0.0
  %46 = vmatpush.msra.mxu0 0.0
  %47 = vmatpush.msra.mxu0 0.0
  %48 = vmatpush.msra.mxu0 0.0
  %49 = vmatpush.msra.mxu0 0.0
  %50 = vmatpush.msra.mxu0 0.0
  %51 = vmatpush.msra.mxu0 0.0
  %52 = vmatpush.msra.mxu0 0.0
  %53 = vmatpush.msra.mxu0 0.0
  %54 = vmatpush.msra.mxu0 0.0
  %55 = vmatpush.msra.mxu0 %v36
  %56 = vmatmul.f32.gmra.mxu0 %v33
  %v57 = vpop.f32.mrf.mxu0
  %v58 = vadd.f32 0.0, %v57
  %59 = vdwg.mxu0
  %60 = vmatpush.msra.mxu0 0.0
  %61 = vmatpush.msra.mxu0 0.0
  %62 = vmatpush.msra.mxu0 0.0
  %63 = vmatpush.msra.mxu0 0.0
  %64 = vmatpush.msra.mxu0 0.0
  %65 = vmatpush.msra.mxu0 0.0
  %66 = vmatpush.msra.mxu0 0.0
  %67 = vmatpush.msra.mxu0 0.0
  %68 = vmatpush.msra.mxu0 0.0
  %69 = vmatpush.msra.mxu0 0.0
  %70 = vmatpush.msra.mxu0 0.0
  %71 = vmatpush.msra.mxu0 0.0
  %72 = vmatpush.msra.mxu0 0.0
  %73 = vmatpush.msra.mxu0 0.0
  %74 = vmatpush.msra.mxu0 0.0
  %75 = vmatpush.msra.mxu0 %v38
  %76 = vmatmul.f32.gmra.mxu0 %v33
  %v77 = vpop.f32.mrf.mxu0
  %v78 = vadd.f32 0.0, %v77
  %79 = vdwg.mxu0
  %v80 = vld [vmem:[%s3] sm:$0xff]
  %v81 = vld [vmem:[%s1] sm:$0xff]
  %83 = vst [vmem:[#allocation1] ss:$2 sm:$0xff] %v81
  %v84 = vld.sshfl [vmem:[#allocation1] sm:$0xff pattern:$0x75316420]
  %v85 = vld.sshfl [vmem:[#allocation1 + $0x8] sm:$0xff pattern:$0x75316420]
  %v87 = vsel %vm31, %v80, 0
  %v89 = vsel %vm35, %v84, 0
  %v91 = vsel %vm35, %v85, 0
  %93 = vmatpush.msra.mxu0 0.0
  %94 = vmatpush.msra.mxu0 0.0
  %95 = vmatpush.msra.mxu0 0.0
  %96 = vmatpush.msra.mxu0 0.0
  %97 = vmatpush.msra.mxu0 0.0
  %98 = vmatpush.msra.mxu0 0.0
  %99 = vmatpush.msra.mxu0 0.0
  %100 = vmatpush.msra.mxu0 0.0
  %101 = vmatpush.msra.mxu0 0.0
  %102 = vmatpush.msra.mxu0 0.0
  %103 = vmatpush.msra.mxu0 0.0
  %104 = vmatpush.msra.mxu0 0.0
  %105 = vmatpush.msra.mxu0 0.0
  %106 = vmatpush.msra.mxu0 0.0
  %107 = vmatpush.msra.mxu0 0.0
  %108 = vmatpush.msra.mxu0 %v89
  %109 = vmatmul.f32.gmra.mxu0 %v87
  %v110 = vpop.f32.mrf.mxu0
  %v111 = vadd.f32 0.0, %v110
  %112 = vdwg.mxu0
  %113 = vmatpush.msra.mxu0 0.0
  %114 = vmatpush.msra.mxu0 0.0
  %115 = vmatpush.msra.mxu0 0.0
  %116 = vmatpush.msra.mxu0 0.0
  %117 = vmatpush.msra.mxu0 0.0
  %118 = vmatpush.msra.mxu0 0.0
  %119 = vmatpush.msra.mxu0 0.0
  %120 = vmatpush.msra.mxu0 0.0
  %121 = vmatpush.msra.mxu0 0.0
  %122 = vmatpush.msra.mxu0 0.0
  %123 = vmatpush.msra.mxu0 0.0
  %124 = vmatpush.msra.mxu0 0.0
  %125 = vmatpush.msra.mxu0 0.0
  %126 = vmatpush.msra.mxu0 0.0
  %127 = vmatpush.msra.mxu0 0.0
  %128 = vmatpush.msra.mxu0 %v91
  %129 = vmatmul.f32.gmra.mxu0 %v87
  %v130 = vpop.f32.mrf.mxu0
  %v131 = vadd.f32 0.0, %v130
  %132 = vdwg.mxu0
  %v133 = vld [vmem:[#allocation2] sm:$0xff]
  %v134 = vadd.f32 %v58, %v78
  %v135 = vadd.f32 %v133, %v134
  %136 = vst [vmem:[#allocation2] sm:$0xff] %v135
  %v137 = vld [vmem:[#allocation3] sm:$0xff]
  %v138 = vmul.f32 %v58, %v58
  %v139 = vmul.f32 %v78, %v78
  %v140 = vadd.f32 %v138, %v139
  %v141 = vadd.f32 %v137, %v140
  %142 = vst [vmem:[#allocation3] sm:$0xff] %v141
  %v143 = vld [vmem:[#allocation4] sm:$0xff]
  %v144 = vadd.f32 %v111, %v131
  %v145 = vadd.f32 %v143, %v144
  %146 = vst [vmem:[#allocation4] sm:$0xff] %v145
  %v147 = vld [vmem:[#allocation5] sm:$0xff]
  %v148 = vmul.f32 %v111, %v111
  %v149 = vmul.f32 %v131, %v131
  %v150 = vadd.f32 %v148, %v149
  %v151 = vadd.f32 %v147, %v150
  %152 = vst [vmem:[#allocation5] sm:$0xff] %v151
  %v153 = vld [vmem:[%s2] sm:$0xff]
  %s154 = scalar_lea.vmem %s0, 8
  %v155 = vld [vmem:[%s154] sm:$0xff]
  %157 = vst [vmem:[#allocation1] ss:$2 sm:$0xff] %v155
  %v158 = vld.sshfl [vmem:[#allocation1] sm:$0xff pattern:$0x75316420]
  %v159 = vld.sshfl [vmem:[#allocation1 + $0x8] sm:$0xff pattern:$0x75316420]
  %v161 = vsel %vm31, %v153, 0
  %v163 = vsel %vm35, %v158, 0
  %v165 = vsel %vm35, %v159, 0
  %167 = vmatpush.msra.mxu0 0.0
  %168 = vmatpush.msra.mxu0 0.0
  %169 = vmatpush.msra.mxu0 0.0
  %170 = vmatpush.msra.mxu0 0.0
  %171 = vmatpush.msra.mxu0 0.0
  %172 = vmatpush.msra.mxu0 0.0
  %173 = vmatpush.msra.mxu0 0.0
  %174 = vmatpush.msra.mxu0 0.0
  %175 = vmatpush.msra.mxu0 0.0
  %176 = vmatpush.msra.mxu0 0.0
  %177 = vmatpush.msra.mxu0 0.0
  %178 = vmatpush.msra.mxu0 0.0
  %179 = vmatpush.msra.mxu0 0.0
  %180 = vmatpush.msra.mxu0 0.0
  %181 = vmatpush.msra.mxu0 0.0
  %182 = vmatpush.msra.mxu0 %v163
  %183 = vmatmul.f32.gmra.mxu0 %v161
  %v184 = vpop.f32.mrf.mxu0
  %v185 = vadd.f32 0.0, %v184
  %186 = vdwg.mxu0
  %187 = vmatpush.msra.mxu0 0.0
  %188 = vmatpush.msra.mxu0 0.0
  %189 = vmatpush.msra.mxu0 0.0
  %190 = vmatpush.msra.mxu0 0.0
  %191 = vmatpush.msra.mxu0 0.0
  %192 = vmatpush.msra.mxu0 0.0
  %193 = vmatpush.msra.mxu0 0.0
  %194 = vmatpush.msra.mxu0 0.0
  %195 = vmatpush.msra.mxu0 0.0
  %196 = vmatpush.msra.mxu0 0.0
  %197 = vmatpush.msra.mxu0 0.0
  %198 = vmatpush.msra.mxu0 0.0
  %199 = vmatpush.msra.mxu0 0.0
  %200 = vmatpush.msra.mxu0 0.0
  %201 = vmatpush.msra.mxu0 0.0
  %202 = vmatpush.msra.mxu0 %v165
  %203 = vmatmul.f32.gmra.mxu0 %v161
  %v204 = vpop.f32.mrf.mxu0
  %v205 = vadd.f32 0.0, %v204
  %206 = vdwg.mxu0
  %v207 = vld [vmem:[%s3] sm:$0xff]
  %s208 = scalar_lea.vmem %s1, 8
  %v209 = vld [vmem:[%s208] sm:$0xff]
  %211 = vst [vmem:[#allocation1] ss:$2 sm:$0xff] %v209
  %v212 = vld.sshfl [vmem:[#allocation1] sm:$0xff pattern:$0x75316420]
  %v213 = vld.sshfl [vmem:[#allocation1 + $0x8] sm:$0xff pattern:$0x75316420]
  %v215 = vsel %vm31, %v207, 0
  %v217 = vsel %vm35, %v212, 0
  %v219 = vsel %vm35, %v213, 0
  %221 = vmatpush.msra.mxu0 0.0
  %222 = vmatpush.msra.mxu0 0.0
  %223 = vmatpush.msra.mxu0 0.0
  %224 = vmatpush.msra.mxu0 0.0
  %225 = vmatpush.msra.mxu0 0.0
  %226 = vmatpush.msra.mxu0 0.0
  %227 = vmatpush.msra.mxu0 0.0
  %228 = vmatpush.msra.mxu0 0.0
  %229 = vmatpush.msra.mxu0 0.0
  %230 = vmatpush.msra.mxu0 0.0
  %231 = vmatpush.msra.mxu0 0.0
  %232 = vmatpush.msra.mxu0 0.0
  %233 = vmatpush.msra.mxu0 0.0
  %234 = vmatpush.msra.mxu0 0.0
  %235 = vmatpush.msra.mxu0 0.0
  %236 = vmatpush.msra.mxu0 %v217
  %237 = vmatmul.f32.gmra.mxu0 %v215
  %v238 = vpop.f32.mrf.mxu0
  %v239 = vadd.f32 0.0, %v238
  %240 = vdwg.mxu0
  %241 = vmatpush.msra.mxu0 0.0
  %242 = vmatpush.msra.mxu0 0.0
  %243 = vmatpush.msra.mxu0 0.0
  %244 = vmatpush.msra.mxu0 0.0
  %245 = vmatpush.msra.mxu0 0.0
  %246 = vmatpush.msra.mxu0 0.0
  %247 = vmatpush.msra.mxu0 0.0
  %248 = vmatpush.msra.mxu0 0.0
  %249 = vmatpush.msra.mxu0 0.0
  %250 = vmatpush.msra.mxu0 0.0
  %251 = vmatpush.msra.mxu0 0.0
  %252 = vmatpush.msra.mxu0 0.0
  %253 = vmatpush.msra.mxu0 0.0
  %254 = vmatpush.msra.mxu0 0.0
  %255 = vmatpush.msra.mxu0 0.0
  %256 = vmatpush.msra.mxu0 %v219
  %257 = vmatmul.f32.gmra.mxu0 %v215
  %v258 = vpop.f32.mrf.mxu0
  %v259 = vadd.f32 0.0, %v258
  %260 = vdwg.mxu0
  %v261 = vld [vmem:[#allocation2] sm:$0xff]
  %v262 = vadd.f32 %v185, %v205
  %v263 = vadd.f32 %v261, %v262
  %264 = vst [vmem:[#allocation2] sm:$0xff] %v263
  %v265 = vld [vmem:[#allocation3] sm:$0xff]
  %v266 = vmul.f32 %v185, %v185
  %v267 = vmul.f32 %v205, %v205
  %v268 = vadd.f32 %v266, %v267
  %v269 = vadd.f32 %v265, %v268
  %270 = vst [vmem:[#allocation3] sm:$0xff] %v269
  %v271 = vld [vmem:[#allocation4] sm:$0xff]
  %v272 = vadd.f32 %v239, %v259
  %v273 = vadd.f32 %v271, %v272
  %274 = vst [vmem:[#allocation4] sm:$0xff] %v273
  %v275 = vld [vmem:[#allocation5] sm:$0xff]
  %v276 = vmul.f32 %v239, %v239
  %v277 = vmul.f32 %v259, %v259
  %v278 = vadd.f32 %v276, %v277
  %v279 = vadd.f32 %v275, %v278
  %280 = vst [vmem:[#allocation5] sm:$0xff] %v279
  // Predicated region
  $region22: #{attention_gate.3} parent=0 // pred_check
    %p281 = pneg %p17
  $region23: #{attention_gate.3} parent=0 // pred_check_branch
    %283 = sbr.rel (%p281) target = $region25
  $region24: #{attention_gate.3} parent=0 // pred_region
    %v284 = vld [vmem:[#allocation2] sm:$0xff]
    %285 = vadd.xlane.f32.xlu0 %v284
    %v286 = vpop.xlane.xlu0 %285
    %vm287 = vcmask 7168
    %288 = vst.msk [vmem:[%s4] sm:$0xff] %vm287, %v286
    %v289 = vld [vmem:[#allocation3] sm:$0xff]
    %290 = vadd.xlane.f32.xlu0 %v289
    %v291 = vpop.xlane.xlu0 %290
    %vm292 = vcmask 15368
    %293 = vst.msk [vmem:[%s4] sm:$0xff] %vm292, %v291
    %v294 = vld [vmem:[#allocation4] sm:$0xff]
    %295 = vadd.xlane.f32.xlu0 %v294
    %v296 = vpop.xlane.xlu0 %295
    %vm297 = vcmask 23568
    %298 = vst.msk [vmem:[%s4] sm:$0xff] %vm297, %v296
    %v299 = vld [vmem:[#allocation5] sm:$0xff]
    %300 = vadd.xlane.f32.xlu0 %v299
    %v301 = vpop.xlane.xlu0 %300
    %vm302 = vcmask 31768
    %303 = vst.msk [vmem:[%s4] sm:$0xff] %vm302, %v301
  $region25: #{attention_gate.3} parent=0 // pred_fallthru
    _
  // Predicated region
  $region26: #{attention_gate.3} parent=0 // pred_check
    _
  $region27: #{attention_gate.3} parent=0 // pred_check_branch
    %305 = sbr.rel (0) target = $region29
  $region28: #{attention_gate.3} parent=0 // pred_region
    _
  $region29: #{attention_gate.3} parent=0 // pred_fallthru
    _
  // Predicated region
  $region30: #{attention_gate.3} parent=0 // pred_check
    _
  $region31: #{attention_gate.3} parent=0 // pred_check_branch
    %307 = sbr.rel (0) target = $region33
  $region32: #{attention_gate.3} parent=0 // pred_region
    _
  $region33: #{attention_gate.3} parent=0 // pred_fallthru
    _

// kernel: attention_gate.4
$region0: #{attention_gate.4}
  #allocation0 [shape = 'u32[]', space=smem, size = 0x4, offset = 0x4, fixed_abs, tag = 'smem constant byte address 0x4 - core index']
  #allocation1 [shape = 'u32[72,128]{1,0:T(1,128)}', space=vmem, size = 0x9000, scoped, tag = 'internal scratch']
  #allocation2 [shape = 'f32[1,128]{1,0:T(1,128)}', space=vmem, size = 0x200, scoped, tag = 'scratch operand']
  #allocation3 [shape = 'f32[1,128]{1,0:T(1,128)}', space=vmem, size = 0x200, scoped, tag = 'scratch operand']
  %s0 = inlined_call_operand.vmem [shape: f32[2,4,256], index: 0, kind: input, shape index: {}]
  %s1 = inlined_call_operand.vmem [shape: f32[2,4,256], index: 1, kind: input, shape index: {}]
  %s2 = inlined_call_operand.vmem [shape: f32[8,4], index: 2, kind: input, shape index: {}]
  %s3 = inlined_call_operand.vmem [shape: f32[8,4], index: 3, kind: input, shape index: {}]
  %s4 = inlined_call_operand.vmem [shape: f32[8,1], index: 4, kind: input, shape index: {}]
  %s5 = inlined_call_operand.vmem [shape: f32[8,1], index: 5, kind: input, shape index: {}]
  %s6 = inlined_call_operand.vmem [shape: f32[2,1,256], index: 6, kind: output, shape index: {0}]
  %s7 = inlined_call_operand.vmem [shape: f32[1,1,2], index: 7, kind: output, shape index: {1}]
  %8 = xla_tuple %s6, %s7
  %s9 = sld [smem:[#allocation0]]
  $region50: #{attention_gate.4} parent=0
    _
  %s11 = ssub.s32 1, %s9
  %s12 = scalar_select 0, %s11, %s9
  // Predicated region
  $region2: #{attention_gate.4} parent=0 // pred_check
    _
  $region3: #{attention_gate.4} parent=0 // pred_check_branch
    %14 = sbr.rel (0) target = $region5
  $region4: #{attention_gate.4} parent=0 // pred_region
    _
  $region5: #{attention_gate.4} parent=0 // pred_fallthru
    _
  // Predicated region
  $region6: #{attention_gate.4} parent=0 // pred_check
    _
  $region7: #{attention_gate.4} parent=0 // pred_check_branch
    %16 = sbr.rel (0) target = $region9
  $region8: #{attention_gate.4} parent=0 // pred_region
    _
  $region9: #{attention_gate.4} parent=0 // pred_fallthru
    _
  // Predicated region
  $region10: #{attention_gate.4} parent=0 // pred_check
    _
  $region11: #{attention_gate.4} parent=0 // pred_check_branch
    %18 = sbr.rel (0) target = $region13
  $region12: #{attention_gate.4} parent=0 // pred_region
    _
  $region13: #{attention_gate.4} parent=0 // pred_fallthru
    _
  // Predicated region
  $region14: #{attention_gate.4} parent=0 // pred_check
    _
  $region15: #{attention_gate.4} parent=0 // pred_check_branch
    %20 = sbr.rel (0) target = $region17
  $region16: #{attention_gate.4} parent=0 // pred_region
    _
  $region17: #{attention_gate.4} parent=0 // pred_fallthru
    _
  // Predicated region
  $region18: #{attention_gate.4} parent=0 // pred_check
    _
  $region19: #{attention_gate.4} parent=0 // pred_check_branch
    %22 = sbr.rel (0) target = $region21
  $region20: #{attention_gate.4} parent=0 // pred_region
    _
  $region21: #{attention_gate.4} parent=0 // pred_fallthru
    _
  // Predicated region
  $region22: #{attention_gate.4} parent=0 // pred_check
    _
  $region23: #{attention_gate.4} parent=0 // pred_check_branch
    %24 = sbr.rel (0) target = $region25
  $region24: #{attention_gate.4} parent=0 // pred_region
    _
  $region25: #{attention_gate.4} parent=0 // pred_fallthru
    _
  %p25 = scmp.eq.s32.totalorder 0, 0
  // Predicated region
  $region26: #{attention_gate.4} parent=0 // pred_check
    %p26 = pneg %p25
  $region27: #{attention_gate.4} parent=0 // pred_check_branch
    %28 = sbr.rel (%p26) target = $region29
  $region28: #{attention_gate.4} parent=0 // pred_region
    %29 = vst [vmem:[#allocation2] sm:$0x1] 0.0
    %30 = vst [vmem:[#allocation3] sm:$0x1] 0.0
  $region29: #{attention_gate.4} parent=0 // pred_fallthru
    _
  %v31 = vld [vmem:[%s2] sm:$0xff]
  %v32 = vld [vmem:[%s0] sm:$0xff]
  %v33 = vld [vmem:[%s3] sm:$0xff]
  %v34 = vld [vmem:[%s1] sm:$0xff]
  %36 = vst [vmem:[#allocation1] ss:$2 sm:$0xff] %v34
  %v37 = vld.sshfl [vmem:[#allocation1] sm:$0xff pattern:$0x75316420]
  %v38 = vld.sshfl [vmem:[#allocation1 + $0x8] sm:$0xff pattern:$0x75316420]
  %vm39 = vcmask 31744
  %v41 = vsel %vm39, %v33, 0
  %vm43 = vcmask 1043456
  %v44 = vsel %vm43, %v37, 0
  %v46 = vsel %vm43, %v38, 0
  %48 = vmatpush.msra.mxu0 0.0
  %49 = vmatpush.msra.mxu0 0.0
  %50 = vmatpush.msra.mxu0 0.0
  %51 = vmatpush.msra.mxu0 0.0
  %52 = vmatpush.msra.mxu0 0.0
  %53 = vmatpush.msra.mxu0 0.0
  %54 = vmatpush.msra.mxu0 0.0
  %55 = vmatpush.msra.mxu0 0.0
  %56 = vmatpush.msra.mxu0 0.0
  %57 = vmatpush.msra.mxu0 0.0
  %58 = vmatpush.msra.mxu0 0.0
  %59 = vmatpush.msra.mxu0 0.0
  %60 = vmatpush.msra.mxu0 0.0
  %61 = vmatpush.msra.mxu0 0.0
  %62 = vmatpush.msra.mxu0 0.0
  %63 = vmatpush.msra.mxu0 %v44
  %64 = vmatmul.f32.gmra.mxu0 %v41
  %v65 = vpop.f32.mrf.mxu0
  %v66 = vadd.f32 0.0, %v65
  %67 = vdwg.mxu0
  %68 = vmatpush.msra.mxu0 0.0
  %69 = vmatpush.msra.mxu0 0.0
  %70 = vmatpush.msra.mxu0 0.0
  %71 = vmatpush.msra.mxu0 0.0
  %72 = vmatpush.msra.mxu0 0.0
  %73 = vmatpush.msra.mxu0 0.0
  %74 = vmatpush.msra.mxu0 0.0
  %75 = vmatpush.msra.mxu0 0.0
  %76 = vmatpush.msra.mxu0 0.0
  %77 = vmatpush.msra.mxu0 0.0
  %78 = vmatpush.msra.mxu0 0.0
  %79 = vmatpush.msra.mxu0 0.0
  %80 = vmatpush.msra.mxu0 0.0
  %81 = vmatpush.msra.mxu0 0.0
  %82 = vmatpush.msra.mxu0 0.0
  %83 = vmatpush.msra.mxu0 %v46
  %84 = vmatmul.f32.gmra.mxu0 %v41
  %v85 = vpop.f32.mrf.mxu0
  %v86 = vadd.f32 0.0, %v85
  %87 = vdwg.mxu0
  %89 = vst [vmem:[#allocation1] ss:$2 sm:$0xff] %v32
  %v90 = vld.sshfl [vmem:[#allocation1] sm:$0xff pattern:$0x75316420]
  %v91 = vld.sshfl [vmem:[#allocation1 + $0x8] sm:$0xff pattern:$0x75316420]
  %v93 = vsel %vm39, %v31, 0
  %v95 = vsel %vm43, %v90, 0
  %v97 = vsel %vm43, %v91, 0
  %99 = vmatpush.msra.mxu0 0.0
  %100 = vmatpush.msra.mxu0 0.0
  %101 = vmatpush.msra.mxu0 0.0
  %102 = vmatpush.msra.mxu0 0.0
  %103 = vmatpush.msra.mxu0 0.0
  %104 = vmatpush.msra.mxu0 0.0
  %105 = vmatpush.msra.mxu0 0.0
  %106 = vmatpush.msra.mxu0 0.0
  %107 = vmatpush.msra.mxu0 0.0
  %108 = vmatpush.msra.mxu0 0.0
  %109 = vmatpush.msra.mxu0 0.0
  %110 = vmatpush.msra.mxu0 0.0
  %111 = vmatpush.msra.mxu0 0.0
  %112 = vmatpush.msra.mxu0 0.0
  %113 = vmatpush.msra.mxu0 0.0
  %114 = vmatpush.msra.mxu0 %v95
  %115 = vmatmul.f32.gmra.mxu0 %v93
  %v116 = vpop.f32.mrf.mxu0
  %v117 = vadd.f32 %v66, %v116
  %118 = vdwg.mxu0
  %119 = vmatpush.msra.mxu0 0.0
  %120 = vmatpush.msra.mxu0 0.0
  %121 = vmatpush.msra.mxu0 0.0
  %122 = vmatpush.msra.mxu0 0.0
  %123 = vmatpush.msra.mxu0 0.0
  %124 = vmatpush.msra.mxu0 0.0
  %125 = vmatpush.msra.mxu0 0.0
  %126 = vmatpush.msra.mxu0 0.0
  %127 = vmatpush.msra.mxu0 0.0
  %128 = vmatpush.msra.mxu0 0.0
  %129 = vmatpush.msra.mxu0 0.0
  %130 = vmatpush.msra.mxu0 0.0
  %131 = vmatpush.msra.mxu0 0.0
  %132 = vmatpush.msra.mxu0 0.0
  %133 = vmatpush.msra.mxu0 0.0
  %134 = vmatpush.msra.mxu0 %v97
  %135 = vmatmul.f32.gmra.mxu0 %v93
  %v136 = vpop.f32.mrf.mxu0
  %v137 = vadd.f32 %v86, %v136
  %138 = vdwg.mxu0
  %v139 = vld [vmem:[%s4] sm:$0xff]
  %141 = vset.pattern.permute.xlu0 0
  %142 = vperm.xlu0 %141, %v139
  %v143 = vpop.permute.xlu0 %142
  %v145 = vadd.f32 %v117, %v143
  %v146 = vadd.f32 %v137, %v143
  %v147 = vmax.f32 %v145, 0.0
  %v148 = vmax.f32 %v146, 0.0
  %v149 = vld [vmem:[%s5] sm:$0xff]
  %151 = vset.pattern.permute.xlu0 0
  %152 = vperm.xlu0 %151, %v149
  %v153 = vpop.permute.xlu0 %152
  %v155 = vmul.f32 %v147, %v153
  %v156 = vmul.f32 %v148, %v153
  %v157 = vrot.slane %v155, 4
  %v158 = vadd.f32 %v155, %v157
  %v159 = vrot.slane %v158, 2
  %v160 = vadd.f32 %v158, %v159
  %v161 = vrot.slane %v160, 1
  %v162 = vadd.f32 %v160, %v161
  %v163 = vrot.slane %v156, 4
  %v164 = vadd.f32 %v156, %v163
  %v165 = vrot.slane %v164, 2
  %v166 = vadd.f32 %v164, %v165
  %v167 = vrot.slane %v166, 1
  %v168 = vadd.f32 %v166, %v167
  %v171 = vrot.slane %v168, 7
  %vm172 = vcmask 1040384
  %v173 = vsel %vm172, %v162, %v171
  %v175 = vlaneseq
  %vm176 = vcmp.ge.s32.totalorder %v175, 0
  %vm177 = vcmp.lt.s32.totalorder %v175, 256
  %vm178 = vmand %vm176, %vm177
  %179 = vst.msk [vmem:[%s6] sm:$0x3] %vm178, %v173
  %v180 = vld [vmem:[#allocation2] sm:$0x1]
  %v181 = vadd.f32 %v162, %v168
  %v182 = vadd.f32 %v180, %v181
  %183 = vst [vmem:[#allocation2] sm:$0x1] %v182
  %v184 = vld [vmem:[#allocation3] sm:$0x1]
  %v185 = vmul.f32 %v162, %v162
  %v186 = vmul.f32 %v168, %v168
  %v187 = vadd.f32 %v185, %v186
  %v188 = vadd.f32 %v184, %v187
  %189 = vst [vmem:[#allocation3] sm:$0x1] %v188
  %v190 = vld [vmem:[%s2] sm:$0xff]
  %s191 = scalar_lea.vmem %s0, 8
  %v192 = vld [vmem:[%s191] sm:$0xff]
  %v193 = vld [vmem:[%s3] sm:$0xff]
  %s194 = scalar_lea.vmem %s1, 8
  %v195 = vld [vmem:[%s194] sm:$0xff]
  %197 = vst [vmem:[#allocation1] ss:$2 sm:$0xff] %v195
  %v198 = vld.sshfl [vmem:[#allocation1] sm:$0xff pattern:$0x75316420]
  %v199 = vld.sshfl [vmem:[#allocation1 + $0x8] sm:$0xff pattern:$0x75316420]
  %v201 = vsel %vm39, %v193, 0
  %v203 = vsel %vm43, %v198, 0
  %v205 = vsel %vm43, %v199, 0
  %207 = vmatpush.msra.mxu0 0.0
  %208 = vmatpush.msra.mxu0 0.0
  %209 = vmatpush.msra.mxu0 0.0
  %210 = vmatpush.msra.mxu0 0.0
  %211 = vmatpush.msra.mxu0 0.0
  %212 = vmatpush.msra.mxu0 0.0
  %213 = vmatpush.msra.mxu0 0.0
  %214 = vmatpush.msra.mxu0 0.0
  %215 = vmatpush.msra.mxu0 0.0
  %216 = vmatpush.msra.mxu0 0.0
  %217 = vmatpush.msra.mxu0 0.0
  %218 = vmatpush.msra.mxu0 0.0
  %219 = vmatpush.msra.mxu0 0.0
  %220 = vmatpush.msra.mxu0 0.0
  %221 = vmatpush.msra.mxu0 0.0
  %222 = vmatpush.msra.mxu0 %v203
  %223 = vmatmul.f32.gmra.mxu0 %v201
  %v224 = vpop.f32.mrf.mxu0
  %v225 = vadd.f32 0.0, %v224
  %226 = vdwg.mxu0
  %227 = vmatpush.msra.mxu0 0.0
  %228 = vmatpush.msra.mxu0 0.0
  %229 = vmatpush.msra.mxu0 0.0
  %230 = vmatpush.msra.mxu0 0.0
  %231 = vmatpush.msra.mxu0 0.0
  %232 = vmatpush.msra.mxu0 0.0
  %233 = vmatpush.msra.mxu0 0.0
  %234 = vmatpush.msra.mxu0 0.0
  %235 = vmatpush.msra.mxu0 0.0
  %236 = vmatpush.msra.mxu0 0.0
  %237 = vmatpush.msra.mxu0 0.0
  %238 = vmatpush.msra.mxu0 0.0
  %239 = vmatpush.msra.mxu0 0.0
  %240 = vmatpush.msra.mxu0 0.0
  %241 = vmatpush.msra.mxu0 0.0
  %242 = vmatpush.msra.mxu0 %v205
  %243 = vmatmul.f32.gmra.mxu0 %v201
  %v244 = vpop.f32.mrf.mxu0
  %v245 = vadd.f32 0.0, %v244
  %246 = vdwg.mxu0
  %248 = vst [vmem:[#allocation1] ss:$2 sm:$0xff] %v192
  %v249 = vld.sshfl [vmem:[#allocation1] sm:$0xff pattern:$0x75316420]
  %v250 = vld.sshfl [vmem:[#allocation1 + $0x8] sm:$0xff pattern:$0x75316420]
  %v252 = vsel %vm39, %v190, 0
  %v254 = vsel %vm43, %v249, 0
  %v256 = vsel %vm43, %v250, 0
  %258 = vmatpush.msra.mxu0 0.0
  %259 = vmatpush.msra.mxu0 0.0
  %260 = vmatpush.msra.mxu0 0.0
  %261 = vmatpush.msra.mxu0 0.0
  %262 = vmatpush.msra.mxu0 0.0
  %263 = vmatpush.msra.mxu0 0.0
  %264 = vmatpush.msra.mxu0 0.0
  %265 = vmatpush.msra.mxu0 0.0
  %266 = vmatpush.msra.mxu0 0.0
  %267 = vmatpush.msra.mxu0 0.0
  %268 = vmatpush.msra.mxu0 0.0
  %269 = vmatpush.msra.mxu0 0.0
  %270 = vmatpush.msra.mxu0 0.0
  %271 = vmatpush.msra.mxu0 0.0
  %272 = vmatpush.msra.mxu0 0.0
  %273 = vmatpush.msra.mxu0 %v254
  %274 = vmatmul.f32.gmra.mxu0 %v252
  %v275 = vpop.f32.mrf.mxu0
  %v276 = vadd.f32 %v225, %v275
  %277 = vdwg.mxu0
  %278 = vmatpush.msra.mxu0 0.0
  %279 = vmatpush.msra.mxu0 0.0
  %280 = vmatpush.msra.mxu0 0.0
  %281 = vmatpush.msra.mxu0 0.0
  %282 = vmatpush.msra.mxu0 0.0
  %283 = vmatpush.msra.mxu0 0.0
  %284 = vmatpush.msra.mxu0 0.0
  %285 = vmatpush.msra.mxu0 0.0
  %286 = vmatpush.msra.mxu0 0.0
  %287 = vmatpush.msra.mxu0 0.0
  %288 = vmatpush.msra.mxu0 0.0
  %289 = vmatpush.msra.mxu0 0.0
  %290 = vmatpush.msra.mxu0 0.0
  %291 = vmatpush.msra.mxu0 0.0
  %292 = vmatpush.msra.mxu0 0.0
  %293 = vmatpush.msra.mxu0 %v256
  %294 = vmatmul.f32.gmra.mxu0 %v252
  %v295 = vpop.f32.mrf.mxu0
  %v296 = vadd.f32 %v245, %v295
  %297 = vdwg.mxu0
  %v298 = vld [vmem:[%s4] sm:$0xff]
  %300 = vset.pattern.permute.xlu0 0
  %301 = vperm.xlu0 %300, %v298
  %v302 = vpop.permute.xlu0 %301
  %v304 = vadd.f32 %v276, %v302
  %v305 = vadd.f32 %v296, %v302
  %v306 = vmax.f32 %v304, 0.0
  %v307 = vmax.f32 %v305, 0.0
  %v308 = vld [vmem:[%s5] sm:$0xff]
  %310 = vset.pattern.permute.xlu0 0
  %311 = vperm.xlu0 %310, %v308
  %v312 = vpop.permute.xlu0 %311
  %v314 = vmul.f32 %v306, %v312
  %v315 = vmul.f32 %v307, %v312
  %v316 = vrot.slane %v314, 4
  %v317 = vadd.f32 %v314, %v316
  %v318 = vrot.slane %v317, 2
  %v319 = vadd.f32 %v317, %v318
  %v320 = vrot.slane %v319, 1
  %v321 = vadd.f32 %v319, %v320
  %v322 = vrot.slane %v315, 4
  %v323 = vadd.f32 %v315, %v322
  %v324 = vrot.slane %v323, 2
  %v325 = vadd.f32 %v323, %v324
  %v326 = vrot.slane %v325, 1
  %v327 = vadd.f32 %v325, %v326
  %v330 = vrot.slane %v327, 7
  %v331 = vsel %vm172, %v321, %v330
  %s333 = scalar_lea.vmem %s6, 2
  %334 = vst.msk [vmem:[%s333] sm:$0x3] %vm178, %v331
  %v335 = vld [vmem:[#allocation2] sm:$0x1]
  %v336 = vadd.f32 %v321, %v327
  %v337 = vadd.f32 %v335, %v336
  %338 = vst [vmem:[#allocation2] sm:$0x1] %v337
  %v339 = vld [vmem:[#allocation3] sm:$0x1]
  %v340 = vmul.f32 %v321, %v321
  %v341 = vmul.f32 %v327, %v327
  %v342 = vadd.f32 %v340, %v341
  %v343 = vadd.f32 %v339, %v342
  %344 = vst [vmem:[#allocation3] sm:$0x1] %v343
  // Predicated region
  $region30: #{attention_gate.4} parent=0 // pred_check
    %p345 = pneg %p25
  $region31: #{attention_gate.4} parent=0 // pred_check_branch
    %347 = sbr.rel (%p345) target = $region33
  $region32: #{attention_gate.4} parent=0 // pred_region
    %v348 = vld [vmem:[#allocation2] sm:$0x1]
    %v349 = vsel %vm172, %v348, 0.0
    %350 = vadd.xlane.f32.xlu0 %v349
    %v351 = vpop.xlane.xlu0 %350
    %vm352 = vcmask 0
    %353 = vst.msk [vmem:[%s7] sm:$0x1] %vm352, %v351
    %v354 = vld [vmem:[#allocation3] sm:$0x1]
    %v355 = vsel %vm172, %v354, 0.0
    %356 = vadd.xlane.f32.xlu0 %v355
    %v357 = vpop.xlane.xlu0 %356
    %vm358 = vcmask 8200
    %359 = vst.msk [vmem:[%s7] sm:$0x1] %vm358, %v357
  $region33: #{attention_gate.4} parent=0 // pred_fallthru
    _
  // Predicated region
  $region34: #{attention_gate.4} parent=0 // pred_check
    _
  $region35: #{attention_gate.4} parent=0 // pred_check_branch
    %361 = sbr.rel (0) target = $region37
  $region36: #{attention_gate.4} parent=0 // pred_region
    _
  $region37: #{attention_gate.4} parent=0 // pred_fallthru
    _
  // Predicated region
  $region38: #{attention_gate.4} parent=0 // pred_check
    _
  $region39: #{attention_gate.4} parent=0 // pred_check_branch
    %363 = sbr.rel (0) target = $region41
  $region40: #{attention_gate.4} parent=0 // pred_region
    _
  $region41: #{attention_gate.4} parent=0 // pred_fallthru
    _
  // Predicated region
  $region42: #{attention_gate.4} parent=0 // pred_check
    _
  $region43: #{attention_gate.4} parent=0 // pred_check_branch
    %365 = sbr.rel (0) target = $region45
  $region44: #{attention_gate.4} parent=0 // pred_region
    _
  $region45: #{attention_gate.4} parent=0 // pred_fallthru
    _
  // Predicated region
  $region46: #{attention_gate.4} parent=0 // pred_check
    _
  $region47: #{attention_gate.4} parent=0 // pred_check_branch
    %367 = sbr.rel (0) target = $region49
  $region48: #{attention_gate.4} parent=0 // pred_region
    _
  $region49: #{attention_gate.4} parent=0 // pred_fallthru
    _

</llo_original>
